<compile_context>
chip_gen: v7x
topology: tpu7x:2x2x1
jax: 0.10.0
libtpu: 0.0.40
codegen_flags: <defaults>
</compile_context>

<pallas_src>
import functools

import jax
import jax.numpy as jnp
from jax.experimental import pallas as pl
from jax.experimental.pallas import tpu as pltpu


def _convt_tanh_kernel(x_ref, w_ref, o_ref):
    # (rows, Cin+1) @ (Cin+1, stride*stride*Cout): bf16 inputs, f32 MXU accumulation,
    # tanh on the EUP, bf16 store (lane-dense, unmasked).
    acc = jnp.dot(x_ref[...], w_ref[...], preferred_element_type=jnp.float32)
    o_ref[...] = jnp.tanh(acc).astype(o_ref.dtype)


@functools.partial(jax.jit, static_argnames=("stride",))
def conv_transpose_tanh(x_nchw, weight, bias, *, stride=8):
    """x_nchw: (1, Cin, H, W); weight: (Cin, Cout, KH, KW) [PyTorch layout]; bias: (Cout,)."""
    N, Cin, H, W = x_nchw.shape
    _, Cout, KH, KW = weight.shape
    assert N == 1
    assert stride >= KH and stride >= KW  # non-overlapping contributions (zero-padded slots)

    P = H * W
    P_pad = -(-P // 8) * 8                      # 221 -> 224 (clean sublane tiles)
    M_pad = stride * stride * Cout              # 2560 = 20 * 128 (lane-dense output)
    K = Cin + 1                                 # +1 ones column carries the bias

    # --- Build matmul operands (inside jit; tiny prologue, fused by XLA) ----------------
    x2d = x_nchw[0].transpose(1, 2, 0).reshape(P, Cin)                      # (P, Cin)
    x2d = jnp.concatenate([x2d, jnp.ones((P, 1), x2d.dtype)], axis=1)       # (P, Cin+1)
    x2d = jnp.pad(x2d, ((0, P_pad - P), (0, 0))).astype(jnp.bfloat16)       # (P_pad, Cin+1)

    # (Cin, KH, KW, Cout) zero-padded to (Cin, stride, stride, Cout), flattened, plus a
    # bias row (bias tiled over all stride*stride kernel slots; cout is fastest axis).
    w_hwio = weight.transpose(0, 2, 3, 1)                                   # (Cin, KH, KW, Cout)
    w_full = jnp.pad(w_hwio, ((0, 0), (0, stride - KH), (0, stride - KW), (0, 0)))
    wmat = w_full.reshape(Cin, M_pad)                                       # (Cin, M_pad)
    bias_row = jnp.tile(bias, stride * stride).reshape(1, M_pad)            # (1, M_pad)
    wmat = jnp.concatenate([wmat, bias_row], axis=0).astype(jnp.bfloat16)   # (K, M_pad)

    # --- Row-tiled Pallas kernel (weight VMEM-resident, output pipelined) ---------------
    rows = next((r for r in (56, 64, 112, 32, 16, 8) if P_pad % r == 0), P_pad)
    grid = (P_pad // rows,)

    y = pl.pallas_call(
        _convt_tanh_kernel,
        out_shape=jax.ShapeDtypeStruct((P_pad, M_pad), jnp.bfloat16),
        grid=grid,
        in_specs=[
            pl.BlockSpec((rows, K), lambda i: (i, 0)),
            pl.BlockSpec((K, M_pad), lambda i: (0, 0)),   # stays resident in VMEM
        ],
        out_specs=pl.BlockSpec((rows, M_pad), lambda i: (i, 0)),
        compiler_params=pltpu.CompilerParams(dimension_semantics=("parallel",)),
    )(x2d, wmat)

    # --- Single-permutation epilogue (crop + cast fuse with the transpose copy) ---------
    Hout = (H - 1) * stride + KH
    Wout = (W - 1) * stride + KW
    out = (
        y[:P]
        .reshape(H, W, stride, stride, Cout)      # (h, w, sh, sw, c)
        .transpose(4, 0, 2, 1, 3)                 # (c, h, sh, w, sw)
        .reshape(Cout, H * stride, W * stride)[:, :Hout, :Wout]
        .astype(jnp.float32)
    )
    return out[None]                              # (1, Cout, Hout, Wout)


if __name__ == "__main__":
    key = jax.random.PRNGKey(0)
    k1, k2, k3 = jax.random.split(key, 3)

    Cin = Cout = 40
    KH = KW = 7
    stride = 8
    H_in, W_in = 17, 13  # matches the PyTorch module's example input (1, 40, 17, 13)

    x1 = jax.random.normal(k1, (1, Cin, H_in, W_in), dtype=jnp.float32)
    # PyTorch ConvTranspose2d weight layout: (Cin, Cout, KH, KW)
    weight = jax.random.normal(k2, (Cin, Cout, KH, KW), dtype=jnp.float32) * 0.05
    bias = jax.random.normal(k3, (Cout,), dtype=jnp.float32) * 0.05

    out = jax.block_until_ready(conv_transpose_tanh(x1, weight, bias, stride=stride))
    Hout = (H_in - 1) * stride + KH
    Wout = (W_in - 1) * stride + KW
    assert out.shape == (1, Cout, Hout, Wout), out.shape

    # Independent f32 reference: transposed conv == dilated conv with flipped/transposed kernel.
    w_flip = weight[:, :, ::-1, ::-1].transpose(1, 0, 2, 3)  # (Cout, Cin, KH, KW)
    ref = jax.lax.conv_general_dilated(
        x1, w_flip, window_strides=(1, 1),
        padding=[(KH - 1, KH - 1), (KW - 1, KW - 1)],
        lhs_dilation=(stride, stride),
        dimension_numbers=("NCHW", "OIHW", "NCHW"),
        precision=jax.lax.Precision.HIGHEST)
    ref = jnp.tanh(ref + bias[None, :, None, None])
    # bf16 operands + bf16 output store vs. f32 reference: tolerance covers both roundings.
    assert jnp.allclose(out, ref, atol=1e-2, rtol=1e-2), float(jnp.max(jnp.abs(out - ref)))

    print("KERNEL_OK")
</pallas_src>

<mosaic_0001>
module attributes {stable_mosaic.version = 11 : i64} {
  func.func @_convt_tanh_kernel(%arg0: i32, %arg1: memref<56x41xbf16, #tpu.memory_space<vmem>>, %arg2: memref<41x2560xbf16, #tpu.memory_space<vmem>>, %arg3: memref<56x2560xbf16, #tpu.memory_space<vmem>>) attributes {dimension_semantics = [#tpu.dimension_semantics<parallel>], iteration_bounds = array<i64: 4>, scalar_prefetch = 0 : i64, scratch_operands = 0 : i64, tpu.core_type = #tpu.core_type<tc>, window_params = [{transform_indices = @transform_0, window_bounds = array<i64: 56, 41>}, {pipeline_mode = #tpu.pipeline_mode<synchronous>, transform_indices = @transform_1, window_bounds = array<i64: 41, 2560>}, {transform_indices = @transform_2, window_bounds = array<i64: 56, 2560>}]} {
    %c0 = arith.constant 0 : index
    %c0_0 = arith.constant 0 : index
    %0 = vector.load %arg1[%c0, %c0_0] : memref<56x41xbf16, #tpu.memory_space<vmem>>, vector<56x41xbf16>
    %c0_1 = arith.constant 0 : index
    %c0_2 = arith.constant 0 : index
    %1 = vector.load %arg2[%c0_1, %c0_2] : memref<41x2560xbf16, #tpu.memory_space<vmem>>, vector<41x2560xbf16>
    %cst = arith.constant dense<0.000000e+00> : vector<56x2560xf32>
    %2 = tpu.matmul %0, %1, %cst {dimension_numbers = #tpu.dot_dimension_numbers<[1], [0], [0], [1], [0, 0, 1, 1], [], []>} : vector<56x41xbf16>, vector<41x2560xbf16>, vector<56x2560xf32> -> vector<56x2560xf32>
    %3 = math.tanh %2 : vector<56x2560xf32>
    %4 = arith.truncf %3 : vector<56x2560xf32> to vector<56x2560xbf16>
    %c0_3 = arith.constant 0 : index
    %c0_4 = arith.constant 0 : index
    %5 = vector.load %arg3[%c0_3, %c0_4] : memref<56x2560xbf16, #tpu.memory_space<vmem>>, vector<56x2560xbf16>
    tpu.vector_store %arg3[%c0_3, %c0_4], %4 {strides = array<i32>} : memref<56x2560xbf16, #tpu.memory_space<vmem>>, vector<56x2560xbf16>,
    return
  }
  func.func @transform_0(%arg0: i32) -> (i32, i32) {
    %c0_i32 = arith.constant 0 : i32
    %c0_i32_0 = arith.constant 0 : i32
    return %arg0, %c0_i32 : i32, i32
  }
  func.func @transform_1(%arg0: i32) -> (i32, i32) {
    %c0_i32 = arith.constant 0 : i32
    %c0_i32_0 = arith.constant 0 : i32
    %c0_i32_1 = arith.constant 0 : i32
    return %c0_i32, %c0_i32_0 : i32, i32
  }
  func.func @transform_2(%arg0: i32) -> (i32, i32) {
    %c0_i32 = arith.constant 0 : i32
    %c0_i32_0 = arith.constant 0 : i32
    return %arg0, %c0_i32 : i32, i32
  }
}

</mosaic_0001>

<llo_original>
// kernel: tile.0
$region0: #{tile.0}
  %s0 = inlined_call_operand.vmem [shape: bf16[64,40], index: 0, kind: input, shape index: {}]
  %s1 = inlined_call_operand.vmem [shape: bf16[1,2560], index: 1, kind: output, shape index: {}]
  $region1: #{tile.0} parent=0
    #allocation0 [shape = 'u8[81920]{0}', space=vmem, size = 0x14000, scoped, tag = 'scoped mem for output reshape']
    #allocation1 [shape = 'u8[32768]{0}', space=vmem, size = 0x8000, scoped, tag = 'scoped mem for input reshape']
    %s3 = smul.u32 4, 2
    %s4 = sshllo.u32 0, %s3
    %s5 = smul.addr 4, 7
    %s6 = scalar_lea.vmem %s0, %s5
    %s7 = sshrl.u32 %s4, 1
    %s8 = sor.u32 %s4, %s7
    %s9 = sand.u32 %s8, 85
    %s10 = sshrl.u32 %s9, 1
    %s11 = sor.u32 %s9, %s10
    %s12 = sand.u32 51, %s11
    %s13 = sshrl.u32 %s12, 2
    %s14 = sor.u32 %s12, %s13
    %s15 = sand.u32 15, %s14
    %v16 = vld [vmem:[%s6] sm:%s15]
    %v17 = vunpack.c.l.bf16 %v16
    %v18 = vunpack.c.h.bf16 %v16
    %s19 = scalar_lea.vmem [#allocation1], 56
    %20 = vst [vmem:[%s19] sm:%s4] %v17
    %s21 = smul.addr 4, 6
    %s22 = scalar_lea.vmem %s0, %s21
    %s23 = sshrl.u32 %s4, 1
    %s24 = sor.u32 %s4, %s23
    %s25 = sand.u32 %s24, 85
    %s26 = sshrl.u32 %s25, 1
    %s27 = sor.u32 %s25, %s26
    %s28 = sand.u32 51, %s27
    %s29 = sshrl.u32 %s28, 2
    %s30 = sor.u32 %s28, %s29
    %s31 = sand.u32 15, %s30
    %v32 = vld [vmem:[%s22] sm:%s31]
    %v33 = vunpack.c.l.bf16 %v32
    %v34 = vunpack.c.h.bf16 %v32
    %s35 = scalar_lea.vmem [#allocation1], 48
    %36 = vst [vmem:[%s35] sm:%s4] %v33
    %s37 = smul.addr 4, 5
    %s38 = scalar_lea.vmem %s0, %s37
    %s39 = sshrl.u32 %s4, 1
    %s40 = sor.u32 %s4, %s39
    %s41 = sand.u32 %s40, 85
    %s42 = sshrl.u32 %s41, 1
    %s43 = sor.u32 %s41, %s42
    %s44 = sand.u32 51, %s43
    %s45 = sshrl.u32 %s44, 2
    %s46 = sor.u32 %s44, %s45
    %s47 = sand.u32 15, %s46
    %v48 = vld [vmem:[%s38] sm:%s47]
    %v49 = vunpack.c.l.bf16 %v48
    %v50 = vunpack.c.h.bf16 %v48
    %s51 = scalar_lea.vmem [#allocation1], 40
    %52 = vst [vmem:[%s51] sm:%s4] %v49
    %s53 = smul.addr 4, 4
    %s54 = scalar_lea.vmem %s0, %s53
    %s55 = sshrl.u32 %s4, 1
    %s56 = sor.u32 %s4, %s55
    %s57 = sand.u32 %s56, 85
    %s58 = sshrl.u32 %s57, 1
    %s59 = sor.u32 %s57, %s58
    %s60 = sand.u32 51, %s59
    %s61 = sshrl.u32 %s60, 2
    %s62 = sor.u32 %s60, %s61
    %s63 = sand.u32 15, %s62
    %v64 = vld [vmem:[%s54] sm:%s63]
    %v65 = vunpack.c.l.bf16 %v64
    %v66 = vunpack.c.h.bf16 %v64
    %s67 = scalar_lea.vmem [#allocation1], 32
    %68 = vst [vmem:[%s67] sm:%s4] %v65
    %s69 = smul.addr 4, 3
    %s70 = scalar_lea.vmem %s0, %s69
    %s71 = sshrl.u32 %s4, 1
    %s72 = sor.u32 %s4, %s71
    %s73 = sand.u32 %s72, 85
    %s74 = sshrl.u32 %s73, 1
    %s75 = sor.u32 %s73, %s74
    %s76 = sand.u32 51, %s75
    %s77 = sshrl.u32 %s76, 2
    %s78 = sor.u32 %s76, %s77
    %s79 = sand.u32 15, %s78
    %v80 = vld [vmem:[%s70] sm:%s79]
    %v81 = vunpack.c.l.bf16 %v80
    %v82 = vunpack.c.h.bf16 %v80
    %s83 = scalar_lea.vmem [#allocation1], 24
    %84 = vst [vmem:[%s83] sm:%s4] %v81
    %s85 = smul.addr 4, 2
    %s86 = scalar_lea.vmem %s0, %s85
    %s87 = sshrl.u32 %s4, 1
    %s88 = sor.u32 %s4, %s87
    %s89 = sand.u32 %s88, 85
    %s90 = sshrl.u32 %s89, 1
    %s91 = sor.u32 %s89, %s90
    %s92 = sand.u32 51, %s91
    %s93 = sshrl.u32 %s92, 2
    %s94 = sor.u32 %s92, %s93
    %s95 = sand.u32 15, %s94
    %v96 = vld [vmem:[%s86] sm:%s95]
    %v97 = vunpack.c.l.bf16 %v96
    %v98 = vunpack.c.h.bf16 %v96
    %s99 = scalar_lea.vmem [#allocation1], 16
    %100 = vst [vmem:[%s99] sm:%s4] %v97
    %s101 = scalar_lea.vmem %s0, 4
    %s102 = sshrl.u32 %s4, 1
    %s103 = sor.u32 %s4, %s102
    %s104 = sand.u32 %s103, 85
    %s105 = sshrl.u32 %s104, 1
    %s106 = sor.u32 %s104, %s105
    %s107 = sand.u32 51, %s106
    %s108 = sshrl.u32 %s107, 2
    %s109 = sor.u32 %s107, %s108
    %s110 = sand.u32 15, %s109
    %v111 = vld [vmem:[%s101] sm:%s110]
    %v112 = vunpack.c.l.bf16 %v111
    %v113 = vunpack.c.h.bf16 %v111
    %s114 = scalar_lea.vmem [#allocation1], 8
    %115 = vst [vmem:[%s114] sm:%s4] %v112
    %s116 = sshrl.u32 %s4, 1
    %s117 = sor.u32 %s4, %s116
    %s118 = sand.u32 %s117, 85
    %s119 = sshrl.u32 %s118, 1
    %s120 = sor.u32 %s118, %s119
    %s121 = sand.u32 51, %s120
    %s122 = sshrl.u32 %s121, 2
    %s123 = sor.u32 %s121, %s122
    %s124 = sand.u32 15, %s123
    %v125 = vld [vmem:[%s0] sm:%s124]
    %v126 = vunpack.c.l.bf16 %v125
    %v127 = vunpack.c.h.bf16 %v125
    %128 = vst [vmem:[#allocation1] sm:%s4] %v126
    %s129 = smov 3
    %v130 = vld [vmem:[#allocation1] ss:$16 sm:%s129]
    %s131 = smov 12
    %v132 = vld [vmem:[#allocation1] ss:$16 sm:%s131]
    %vm133 = vcmask 1043458
    %v134 = vsel %vm133, %v132, %v130
    %vm135 = vcmask 326656
    %136 = vst.msk [vmem:[#allocation0] ss:$40 sm:$0xf] %vm135, %v134
    %s137 = scalar_lea.vmem [#allocation1], 51
    %s138 = smov 3
    %v139 = vld [vmem:[%s137] ss:$-48 sm:%s138]
    %s140 = scalar_lea.vmem [#allocation1], 4294967283
    %s141 = smov 12
    %v142 = vld [vmem:[%s140] ss:$16 sm:%s141]
    %vm143 = vcmask 1043458
    %v144 = vsel %vm143, %v142, %v139
    %s145 = scalar_lea.vmem [#allocation1], 3
    %s146 = smov 3
    %v147 = vld [vmem:[%s145] ss:$16 sm:%s146]
    %s148 = scalar_lea.vmem [#allocation1], 3
    %s149 = smov 12
    %v150 = vld [vmem:[%s148] ss:$16 sm:%s149]
    %vm151 = vcmask 1043458
    %v152 = vsel %vm151, %v150, %v147
    %vm153 = vcmask 64512
    %v154 = vsel %vm153, %v152, %v144
    %155 = vrot.lane.b32.xlu0 %v154, 120
    %v156 = vpop.permute.xlu0 %155
    %vm157 = vcmask 261120
    %s158 = scalar_lea.vmem [#allocation0], 128
    %159 = vst.msk [vmem:[%s158] ss:$-120 sm:$0x3] %vm157, %v156
    %s160 = scalar_lea.vmem [#allocation0], 4294967264
    %161 = vst.msk [vmem:[%s160] ss:$40 sm:$0xc] %vm157, %v156
    %vm162 = vcmask 1048512
    %163 = vst.msk [vmem:[#allocation0] ss:$40 sm:$0xf] %vm162, %v156
    %s164 = scalar_lea.vmem [#allocation1], 38
    %s165 = smov 3
    %v166 = vld [vmem:[%s164] ss:$16 sm:%s165]
    %s167 = scalar_lea.vmem [#allocation1], 4294967270
    %s168 = smov 12
    %v169 = vld [vmem:[%s167] ss:$16 sm:%s168]
    %vm170 = vcmask 1043458
    %v171 = vsel %vm170, %v169, %v166
    %s172 = scalar_lea.vmem [#allocation1], 54
    %s173 = smov 3
    %v174 = vld [vmem:[%s172] ss:$-48 sm:%s173]
    %s175 = scalar_lea.vmem [#allocation1], 4294967286
    %s176 = smov 12
    %v177 = vld [vmem:[%s175] ss:$16 sm:%s176]
    %vm178 = vcmask 1043458
    %v179 = vsel %vm178, %v177, %v174
    %vm180 = vcmask 130048
    %v181 = vsel %vm180, %v179, %v171
    %182 = vrot.lane.b32.xlu0 %v181, 112
    %v183 = vpop.permute.xlu0 %182
    %vm184 = vcmask 195584
    %s185 = scalar_lea.vmem [#allocation0], 96
    %186 = vst.msk [vmem:[%s185] ss:$40 sm:$0x3] %vm184, %v183
    %s187 = scalar_lea.vmem [#allocation0], 4294967232
    %188 = vst.msk [vmem:[%s187] ss:$40 sm:$0xc] %vm184, %v183
    %vm189 = vcmask 1048448
    %s190 = scalar_lea.vmem [#allocation0], 128
    %191 = vst.msk [vmem:[%s190] ss:$-120 sm:$0x3] %vm189, %v183
    %s192 = scalar_lea.vmem [#allocation0], 4294967264
    %193 = vst.msk [vmem:[%s192] ss:$40 sm:$0xc] %vm189, %v183
    %s194 = scalar_lea.vmem [#allocation1], 25
    %s195 = smov 3
    %v196 = vld [vmem:[%s194] ss:$16 sm:%s195]
    %s197 = scalar_lea.vmem [#allocation1], 153
    %s198 = smov 12
    %v199 = vld [vmem:[%s197] ss:$-48 sm:%s198]
    %vm200 = vcmask 1043458
    %v201 = vsel %vm200, %v199, %v196
    %s202 = scalar_lea.vmem [#allocation1], 41
    %s203 = smov 3
    %v204 = vld [vmem:[%s202] ss:$16 sm:%s203]
    %s205 = scalar_lea.vmem [#allocation1], 4294967273
    %s206 = smov 12
    %v207 = vld [vmem:[%s205] ss:$16 sm:%s206]
    %vm208 = vcmask 1043458
    %v209 = vsel %vm208, %v207, %v204
    %vm210 = vcmask 195584
    %v211 = vsel %vm210, %v209, %v201
    %212 = vrot.lane.b32.xlu0 %v211, 104
    %v213 = vpop.permute.xlu0 %212
    %vm214 = vcmask 130048
    %s215 = scalar_lea.vmem [#allocation0], 64
    %216 = vst.msk [vmem:[%s215] ss:$40 sm:$0x7] %vm214, %v213
    %s217 = scalar_lea.vmem [#allocation0], 21
    %218 = vst.msk [vmem:[%s217] sm:$0x8] %vm214, %v213
    %vm219 = vcmask 1048384
    %s220 = scalar_lea.vmem [#allocation0], 96
    %221 = vst.msk [vmem:[%s220] ss:$40 sm:$0x3] %vm219, %v213
    %s222 = scalar_lea.vmem [#allocation0], 4294967232
    %223 = vst.msk [vmem:[%s222] ss:$40 sm:$0xc] %vm219, %v213
    %s224 = scalar_lea.vmem [#allocation1], 12
    %s225 = smov 3
    %v226 = vld [vmem:[%s224] ss:$16 sm:%s225]
    %s227 = scalar_lea.vmem [#allocation1], 12
    %s228 = smov 12
    %v229 = vld [vmem:[%s227] ss:$16 sm:%s228]
    %vm230 = vcmask 1043458
    %v231 = vsel %vm230, %v229, %v226
    %s232 = scalar_lea.vmem [#allocation1], 28
    %s233 = smov 3
    %v234 = vld [vmem:[%s232] ss:$16 sm:%s233]
    %s235 = scalar_lea.vmem [#allocation1], 156
    %s236 = smov 12
    %v237 = vld [vmem:[%s235] ss:$-48 sm:%s236]
    %vm238 = vcmask 1043458
    %v239 = vsel %vm238, %v237, %v234
    %vm240 = vcmask 261120
    %v241 = vsel %vm240, %v239, %v231
    %242 = vrot.lane.b32.xlu0 %v241, 96
    %v243 = vpop.permute.xlu0 %242
    %vm244 = vcmask 64512
    %s245 = scalar_lea.vmem [#allocation0], 32
    %246 = vst.msk [vmem:[%s245] ss:$40 sm:$0xf] %vm244, %v243
    %vm247 = vcmask 1048320
    %s248 = scalar_lea.vmem [#allocation0], 64
    %249 = vst.msk [vmem:[%s248] ss:$40 sm:$0x7] %vm247, %v243
    %s250 = scalar_lea.vmem [#allocation0], 21
    %251 = vst.msk [vmem:[%s250] sm:$0x8] %vm247, %v243
    %s252 = scalar_lea.vmem [#allocation1], 15
    %s253 = smov 3
    %v254 = vld [vmem:[%s252] ss:$16 sm:%s253]
    %s255 = scalar_lea.vmem [#allocation1], 15
    %s256 = smov 12
    %v257 = vld [vmem:[%s255] ss:$16 sm:%s256]
    %vm258 = vcmask 1043458
    %v259 = vsel %vm258, %v257, %v254
    %260 = vrot.lane.b32.xlu0 %v259, 88
    %v261 = vpop.permute.xlu0 %260
    %vm262 = vcmask 1048256
    %s263 = scalar_lea.vmem [#allocation0], 32
    %264 = vst.msk [vmem:[%s263] ss:$40 sm:$0xf] %vm262, %v261
    %s265 = scalar_lea.vmem [#allocation1], 2
    %s266 = smov 3
    %v267 = vld [vmem:[%s265] ss:$16 sm:%s266]
    %s268 = scalar_lea.vmem [#allocation1], 2
    %s269 = smov 12
    %v270 = vld [vmem:[%s268] ss:$16 sm:%s269]
    %vm271 = vcmask 1043458
    %v272 = vsel %vm271, %v270, %v267
    %273 = vrot.lane.b32.xlu0 %v272, 80
    %v274 = vpop.permute.xlu0 %273
    %vm275 = vcmask 982656
    %276 = vst.msk [vmem:[#allocation0] ss:$40 sm:$0xf] %vm275, %v274
    %s277 = scalar_lea.vmem [#allocation1], 53
    %s278 = smov 3
    %v279 = vld [vmem:[%s277] ss:$-48 sm:%s278]
    %s280 = scalar_lea.vmem [#allocation1], 4294967285
    %s281 = smov 12
    %v282 = vld [vmem:[%s280] ss:$16 sm:%s281]
    %vm283 = vcmask 1043458
    %v284 = vsel %vm283, %v282, %v279
    %285 = vrot.lane.b32.xlu0 %v284, 72
    %v286 = vpop.permute.xlu0 %285
    %vm287 = vcmask 917056
    %s288 = scalar_lea.vmem [#allocation0], 128
    %289 = vst.msk [vmem:[%s288] ss:$-120 sm:$0x3] %vm287, %v286
    %s290 = scalar_lea.vmem [#allocation0], 4294967264
    %291 = vst.msk [vmem:[%s290] ss:$40 sm:$0xc] %vm287, %v286
    %s292 = scalar_lea.vmem [#allocation1], 40
    %s293 = smov 3
    %v294 = vld [vmem:[%s292] ss:$16 sm:%s293]
    %s295 = scalar_lea.vmem [#allocation1], 4294967272
    %s296 = smov 12
    %v297 = vld [vmem:[%s295] ss:$16 sm:%s296]
    %vm298 = vcmask 1043458
    %v299 = vsel %vm298, %v297, %v294
    %300 = vrot.lane.b32.xlu0 %v299, 64
    %v301 = vpop.permute.xlu0 %300
    %vm302 = vcmask 851456
    %s303 = scalar_lea.vmem [#allocation0], 96
    %304 = vst.msk [vmem:[%s303] ss:$40 sm:$0x3] %vm302, %v301
    %s305 = scalar_lea.vmem [#allocation0], 4294967232
    %306 = vst.msk [vmem:[%s305] ss:$40 sm:$0xc] %vm302, %v301
    %s307 = scalar_lea.vmem [#allocation1], 27
    %s308 = smov 3
    %v309 = vld [vmem:[%s307] ss:$16 sm:%s308]
    %s310 = scalar_lea.vmem [#allocation1], 155
    %s311 = smov 12
    %v312 = vld [vmem:[%s310] ss:$-48 sm:%s311]
    %vm313 = vcmask 1043458
    %v314 = vsel %vm313, %v312, %v309
    %315 = vrot.lane.b32.xlu0 %v314, 56
    %v316 = vpop.permute.xlu0 %315
    %vm317 = vcmask 785856
    %s318 = scalar_lea.vmem [#allocation0], 64
    %319 = vst.msk [vmem:[%s318] ss:$40 sm:$0x7] %vm317, %v316
    %s320 = scalar_lea.vmem [#allocation0], 21
    %321 = vst.msk [vmem:[%s320] sm:$0x8] %vm317, %v316
    %s322 = scalar_lea.vmem [#allocation1], 14
    %s323 = smov 3
    %v324 = vld [vmem:[%s322] ss:$16 sm:%s323]
    %s325 = scalar_lea.vmem [#allocation1], 14
    %s326 = smov 12
    %v327 = vld [vmem:[%s325] ss:$16 sm:%s326]
    %vm328 = vcmask 1043458
    %v329 = vsel %vm328, %v327, %v324
    %330 = vrot.lane.b32.xlu0 %v329, 48
    %v331 = vpop.permute.xlu0 %330
    %vm332 = vcmask 720256
    %s333 = scalar_lea.vmem [#allocation0], 32
    %334 = vst.msk [vmem:[%s333] ss:$40 sm:$0xf] %vm332, %v331
    %s335 = scalar_lea.vmem [#allocation1], 1
    %s336 = smov 3
    %v337 = vld [vmem:[%s335] ss:$16 sm:%s336]
    %s338 = scalar_lea.vmem [#allocation1], 1
    %s339 = smov 12
    %v340 = vld [vmem:[%s338] ss:$16 sm:%s339]
    %vm341 = vcmask 1043458
    %v342 = vsel %vm341, %v340, %v337
    %343 = vrot.lane.b32.xlu0 %v342, 40
    %v344 = vpop.permute.xlu0 %343
    %vm345 = vcmask 654656
    %346 = vst.msk [vmem:[#allocation0] ss:$40 sm:$0xf] %vm345, %v344
    %s347 = scalar_lea.vmem [#allocation1], 52
    %s348 = smov 3
    %v349 = vld [vmem:[%s347] ss:$-48 sm:%s348]
    %s350 = scalar_lea.vmem [#allocation1], 4294967284
    %s351 = smov 12
    %v352 = vld [vmem:[%s350] ss:$16 sm:%s351]
    %vm353 = vcmask 1043458
    %v354 = vsel %vm353, %v352, %v349
    %355 = vrot.lane.b32.xlu0 %v354, 32
    %v356 = vpop.permute.xlu0 %355
    %vm357 = vcmask 589056
    %s358 = scalar_lea.vmem [#allocation0], 128
    %359 = vst.msk [vmem:[%s358] ss:$-120 sm:$0x3] %vm357, %v356
    %s360 = scalar_lea.vmem [#allocation0], 4294967264
    %361 = vst.msk [vmem:[%s360] ss:$40 sm:$0xc] %vm357, %v356
    %s362 = scalar_lea.vmem [#allocation1], 39
    %s363 = smov 3
    %v364 = vld [vmem:[%s362] ss:$16 sm:%s363]
    %s365 = scalar_lea.vmem [#allocation1], 4294967271
    %s366 = smov 12
    %v367 = vld [vmem:[%s365] ss:$16 sm:%s366]
    %vm368 = vcmask 1043458
    %v369 = vsel %vm368, %v367, %v364
    %370 = vrot.lane.b32.xlu0 %v369, 24
    %v371 = vpop.permute.xlu0 %370
    %vm372 = vcmask 523456
    %s373 = scalar_lea.vmem [#allocation0], 96
    %374 = vst.msk [vmem:[%s373] ss:$40 sm:$0x3] %vm372, %v371
    %s375 = scalar_lea.vmem [#allocation0], 4294967232
    %376 = vst.msk [vmem:[%s375] ss:$40 sm:$0xc] %vm372, %v371
    %s377 = scalar_lea.vmem [#allocation1], 26
    %s378 = smov 3
    %v379 = vld [vmem:[%s377] ss:$16 sm:%s378]
    %s380 = scalar_lea.vmem [#allocation1], 154
    %s381 = smov 12
    %v382 = vld [vmem:[%s380] ss:$-48 sm:%s381]
    %vm383 = vcmask 1043458
    %v384 = vsel %vm383, %v382, %v379
    %385 = vrot.lane.b32.xlu0 %v384, 16
    %v386 = vpop.permute.xlu0 %385
    %vm387 = vcmask 457856
    %s388 = scalar_lea.vmem [#allocation0], 64
    %389 = vst.msk [vmem:[%s388] ss:$40 sm:$0x7] %vm387, %v386
    %s390 = scalar_lea.vmem [#allocation0], 21
    %391 = vst.msk [vmem:[%s390] sm:$0x8] %vm387, %v386
    %s392 = scalar_lea.vmem [#allocation1], 13
    %s393 = smov 3
    %v394 = vld [vmem:[%s392] ss:$16 sm:%s393]
    %s395 = scalar_lea.vmem [#allocation1], 13
    %s396 = smov 12
    %v397 = vld [vmem:[%s395] ss:$16 sm:%s396]
    %vm398 = vcmask 1043458
    %v399 = vsel %vm398, %v397, %v394
    %400 = vrot.lane.b32.xlu0 %v399, 8
    %v401 = vpop.permute.xlu0 %400
    %vm402 = vcmask 392256
    %s403 = scalar_lea.vmem [#allocation0], 32
    %404 = vst.msk [vmem:[%s403] ss:$40 sm:$0xf] %vm402, %v401
    %s406 = smul.u32 1, 2
    %s407 = sshllo.u32 0, %s406
    %s408 = sshrl.u32 %s406, 1
    %v409 = vld [vmem:[#allocation0] sm:%s407]
    %v410 = vpack.c.bf16 0.0, %v409
    %s411 = sshllo.u32 0, %s408
    %412 = vst [vmem:[%s1] sm:%s411] %v410
    %s413 = scalar_lea.vmem [#allocation0], 8
    %v414 = vld [vmem:[%s413] sm:%s407]
    %v415 = vpack.c.bf16 0.0, %v414
    %s416 = sshllo.u32 0, %s408
    %s417 = scalar_lea.vmem %s1, 1
    %418 = vst [vmem:[%s417] sm:%s416] %v415
    %s419 = scalar_lea.vmem [#allocation0], 16
    %v420 = vld [vmem:[%s419] sm:%s407]
    %v421 = vpack.c.bf16 0.0, %v420
    %s422 = sshllo.u32 0, %s408
    %s423 = smul.addr 1, 2
    %s424 = scalar_lea.vmem %s1, %s423
    %425 = vst [vmem:[%s424] sm:%s422] %v421
    %s426 = scalar_lea.vmem [#allocation0], 24
    %v427 = vld [vmem:[%s426] sm:%s407]
    %v428 = vpack.c.bf16 0.0, %v427
    %s429 = sshllo.u32 0, %s408
    %s430 = smul.addr 1, 3
    %s431 = scalar_lea.vmem %s1, %s430
    %432 = vst [vmem:[%s431] sm:%s429] %v428
    %s433 = scalar_lea.vmem [#allocation0], 32
    %v434 = vld [vmem:[%s433] sm:%s407]
    %v435 = vpack.c.bf16 0.0, %v434
    %s436 = sshllo.u32 0, %s408
    %s437 = smul.addr 1, 4
    %s438 = scalar_lea.vmem %s1, %s437
    %439 = vst [vmem:[%s438] sm:%s436] %v435
    %s440 = scalar_lea.vmem [#allocation0], 40
    %v441 = vld [vmem:[%s440] sm:%s407]
    %v442 = vpack.c.bf16 0.0, %v441
    %s443 = sshllo.u32 0, %s408
    %s444 = smul.addr 1, 5
    %s445 = scalar_lea.vmem %s1, %s444
    %446 = vst [vmem:[%s445] sm:%s443] %v442
    %s447 = scalar_lea.vmem [#allocation0], 48
    %v448 = vld [vmem:[%s447] sm:%s407]
    %v449 = vpack.c.bf16 0.0, %v448
    %s450 = sshllo.u32 0, %s408
    %s451 = smul.addr 1, 6
    %s452 = scalar_lea.vmem %s1, %s451
    %453 = vst [vmem:[%s452] sm:%s450] %v449
    %s454 = scalar_lea.vmem [#allocation0], 56
    %v455 = vld [vmem:[%s454] sm:%s407]
    %v456 = vpack.c.bf16 0.0, %v455
    %s457 = sshllo.u32 0, %s408
    %s458 = smul.addr 1, 7
    %s459 = scalar_lea.vmem %s1, %s458
    %460 = vst [vmem:[%s459] sm:%s457] %v456
    %s461 = scalar_lea.vmem [#allocation0], 64
    %v462 = vld [vmem:[%s461] sm:%s407]
    %v463 = vpack.c.bf16 0.0, %v462
    %s464 = sshllo.u32 0, %s408
    %s465 = smul.addr 1, 8
    %s466 = scalar_lea.vmem %s1, %s465
    %467 = vst [vmem:[%s466] sm:%s464] %v463
    %s468 = scalar_lea.vmem [#allocation0], 72
    %v469 = vld [vmem:[%s468] sm:%s407]
    %v470 = vpack.c.bf16 0.0, %v469
    %s471 = sshllo.u32 0, %s408
    %s472 = smul.addr 1, 9
    %s473 = scalar_lea.vmem %s1, %s472
    %474 = vst [vmem:[%s473] sm:%s471] %v470
    %s475 = scalar_lea.vmem [#allocation0], 80
    %v476 = vld [vmem:[%s475] sm:%s407]
    %v477 = vpack.c.bf16 0.0, %v476
    %s478 = sshllo.u32 0, %s408
    %s479 = smul.addr 1, 10
    %s480 = scalar_lea.vmem %s1, %s479
    %481 = vst [vmem:[%s480] sm:%s478] %v477
    %s482 = scalar_lea.vmem [#allocation0], 88
    %v483 = vld [vmem:[%s482] sm:%s407]
    %v484 = vpack.c.bf16 0.0, %v483
    %s485 = sshllo.u32 0, %s408
    %s486 = smul.addr 1, 11
    %s487 = scalar_lea.vmem %s1, %s486
    %488 = vst [vmem:[%s487] sm:%s485] %v484
    %s489 = scalar_lea.vmem [#allocation0], 96
    %v490 = vld [vmem:[%s489] sm:%s407]
    %v491 = vpack.c.bf16 0.0, %v490
    %s492 = sshllo.u32 0, %s408
    %s493 = smul.addr 1, 12
    %s494 = scalar_lea.vmem %s1, %s493
    %495 = vst [vmem:[%s494] sm:%s492] %v491
    %s496 = scalar_lea.vmem [#allocation0], 104
    %v497 = vld [vmem:[%s496] sm:%s407]
    %v498 = vpack.c.bf16 0.0, %v497
    %s499 = sshllo.u32 0, %s408
    %s500 = smul.addr 1, 13
    %s501 = scalar_lea.vmem %s1, %s500
    %502 = vst [vmem:[%s501] sm:%s499] %v498
    %s503 = scalar_lea.vmem [#allocation0], 112
    %v504 = vld [vmem:[%s503] sm:%s407]
    %v505 = vpack.c.bf16 0.0, %v504
    %s506 = sshllo.u32 0, %s408
    %s507 = smul.addr 1, 14
    %s508 = scalar_lea.vmem %s1, %s507
    %509 = vst [vmem:[%s508] sm:%s506] %v505
    %s510 = scalar_lea.vmem [#allocation0], 120
    %v511 = vld [vmem:[%s510] sm:%s407]
    %v512 = vpack.c.bf16 0.0, %v511
    %s513 = sshllo.u32 0, %s408
    %s514 = smul.addr 1, 15
    %s515 = scalar_lea.vmem %s1, %s514
    %516 = vst [vmem:[%s515] sm:%s513] %v512
    %s517 = scalar_lea.vmem [#allocation0], 128
    %v518 = vld [vmem:[%s517] sm:%s407]
    %v519 = vpack.c.bf16 0.0, %v518
    %s520 = sshllo.u32 0, %s408
    %s521 = smul.addr 1, 16
    %s522 = scalar_lea.vmem %s1, %s521
    %523 = vst [vmem:[%s522] sm:%s520] %v519
    %s524 = scalar_lea.vmem [#allocation0], 136
    %v525 = vld [vmem:[%s524] sm:%s407]
    %v526 = vpack.c.bf16 0.0, %v525
    %s527 = sshllo.u32 0, %s408
    %s528 = smul.addr 1, 17
    %s529 = scalar_lea.vmem %s1, %s528
    %530 = vst [vmem:[%s529] sm:%s527] %v526
    %s531 = scalar_lea.vmem [#allocation0], 144
    %v532 = vld [vmem:[%s531] sm:%s407]
    %v533 = vpack.c.bf16 0.0, %v532
    %s534 = sshllo.u32 0, %s408
    %s535 = smul.addr 1, 18
    %s536 = scalar_lea.vmem %s1, %s535
    %537 = vst [vmem:[%s536] sm:%s534] %v533
    %s538 = scalar_lea.vmem [#allocation0], 152
    %v539 = vld [vmem:[%s538] sm:%s407]
    %v540 = vpack.c.bf16 0.0, %v539
    %s541 = sshllo.u32 0, %s408
    %s542 = smul.addr 1, 19
    %s543 = scalar_lea.vmem %s1, %s542
    %544 = vst [vmem:[%s543] sm:%s541] %v540

// kernel: conv_transpose_tanh.1
$region0: #{conv_transpose_tanh.1}
  #allocation0 [shape = 'u32[]', space=smem, size = 0x4, offset = 0x4, fixed_abs, tag = 'smem constant byte address 0x4 - core index']
  #allocation1 [shape = 'u32[144,128]{1,0:T(1,128)}', space=vmem, size = 0x12000, scoped, tag = 'internal scratch']
  %s0 = inlined_call_operand.vmem [shape: bf16[224,41], index: 0, kind: input, shape index: {}]
  %s1 = inlined_call_operand.vmem [shape: bf16[41,2560], index: 1, kind: input, shape index: {}]
  %s2 = inlined_call_operand.vmem [shape: bf16[224,2560], index: 2, kind: output, shape index: {}]
  %s3 = sld [smem:[#allocation0]]
  $region41: #{conv_transpose_tanh.1} parent=0
    _
  %s5 = ssub.s32 1, %s3
  %s6 = scalar_select 0, %s5, %s3
  loop: start=0, step=1, limit=6
  $region2: #{conv_transpose_tanh.1} parent=0 // loop_pre_header
    _
  $region3: #{conv_transpose_tanh.1} parent=0 // loop_header
    %s8 = sphi 0, %s12
    %p9 = scmp.ge.s32.totalorder %s8, 6
    %s18 = sphi 0, %s20
    %s21 = sphi 0, %s18
    %s22 = sphi 0, %s21
    %s38 = sphi 0, %s22
    %s42 = sphi 0, %s42
    %s44 = sphi 0, %s42
    %s45 = sphi 0, %s44
    %s59 = sphi 0, %s45
    %s65 = sphi 0, %s67
    %s68 = sphi 0, %s65
    %s69 = sphi 0, %s68
    %s85 = sphi 0, %s69
  $region4: #{conv_transpose_tanh.1} parent=0 // loop_header_branch
    %11 = sbr.rel (%p9) target = $region8
  $region5: #{conv_transpose_tanh.1} parent=0 // loop_body
    %s13 = ssub.s32 %s8, 1
    %s14 = ssub.s32 %s8, 2
    %s15 = sadd.s32 %s8, 1
    %s16 = ssub.s32 %s8, %s15
    %p17 = scmp.eq.s32.totalorder %s16, 0
    %s19 = sadd.s32 %s18, 1
    %s20 = scalar_select %p17, %s18, %s19
    %p23 = pneg %p17
    %p24 = scmp.eq.s32.totalorder %s8, 3
    %p25 = por %p23, %p24
    %p26 = scmp.ne.s32.totalorder %s18, %s21
    %p27 = scmp.eq.s32.totalorder %s8, 0
    %p28 = por %p26, %p27
    %p29 = scmp.ne.s32.totalorder %s18, %s21
    %p30 = scmp.eq.s32.totalorder %s13, 3
    %p31 = por %p29, %p30
    %p32 = scmp.ne.s32.totalorder %s21, %s22
    %p33 = scmp.eq.s32.totalorder %s13, 0
    %p34 = por %p32, %p33
    %p35 = scmp.ne.s32.totalorder %s21, %s22
    %p36 = scmp.eq.s32.totalorder %s14, 3
    %p37 = por %p35, %p36
    %p39 = scmp.ne.s32.totalorder %s22, %s38
    %p40 = scmp.eq.s32.totalorder %s14, 0
    %p41 = por %p39, %p40
    %s43 = sadd.s32 %s42, 1
    %p46 = scmp.eq.s32.totalorder %s8, 3
    %p47 = scmp.ne.s32.totalorder %s42, %s44
    %p48 = scmp.eq.s32.totalorder %s8, 0
    %p49 = por %p47, %p48
    %p50 = scmp.ne.s32.totalorder %s42, %s44
    %p51 = scmp.eq.s32.totalorder %s13, 3
    %p52 = por %p50, %p51
    %p53 = scmp.ne.s32.totalorder %s44, %s45
    %p54 = scmp.eq.s32.totalorder %s13, 0
    %p55 = por %p53, %p54
    %p56 = scmp.ne.s32.totalorder %s44, %s45
    %p57 = scmp.eq.s32.totalorder %s14, 3
    %p58 = por %p56, %p57
    %p60 = scmp.ne.s32.totalorder %s45, %s59
    %p61 = scmp.eq.s32.totalorder %s14, 0
    %p62 = por %p60, %p61
    %s63 = ssub.s32 %s8, %s15
    %p64 = scmp.eq.s32.totalorder %s63, 0
    %s66 = sadd.s32 %s65, 1
    %s67 = scalar_select %p64, %s65, %s66
    %p70 = pneg %p64
    %p71 = scmp.eq.s32.totalorder %s8, 3
    %p72 = por %p70, %p71
    %p73 = scmp.ne.s32.totalorder %s65, %s68
    %p74 = scmp.eq.s32.totalorder %s8, 0
    %p75 = por %p73, %p74
    %p76 = scmp.ne.s32.totalorder %s65, %s68
    %p77 = scmp.eq.s32.totalorder %s13, 3
    %p78 = por %p76, %p77
    %p79 = scmp.ne.s32.totalorder %s68, %s69
    %p80 = scmp.eq.s32.totalorder %s13, 0
    %p81 = por %p79, %p80
    %p82 = scmp.ne.s32.totalorder %s68, %s69
    %p83 = scmp.eq.s32.totalorder %s14, 3
    %p84 = por %p82, %p83
    %p86 = scmp.ne.s32.totalorder %s69, %s85
    %p87 = scmp.eq.s32.totalorder %s14, 0
    %p88 = por %p86, %p87
    %p89 = scmp.le.s32.totalorder 1, %s8
    %p90 = scmp.lt.s32.totalorder %s8, 5
    %p91 = pnand %p89, %p90
    %p92 = pneg %p91
    // Predicated region
    $region9: #{conv_transpose_tanh.1} parent=5 // pred_check
      _
    $region10: #{conv_transpose_tanh.1} parent=5 // pred_check_branch
      %94 = sbr.rel (%p91) target = $region12
    $region11: #{conv_transpose_tanh.1} parent=5 // pred_region
      %s95 = ssub.s32 %s8, 1
      // Predicated region
      $region13: #{conv_transpose_tanh.1} parent=11 // pred_check
        %p96 = pneg %p55
      $region14: #{conv_transpose_tanh.1} parent=11 // pred_check_branch
        %98 = sbr.rel (%p96) target = $region16
      $region15: #{conv_transpose_tanh.1} parent=11 // pred_region
        _
      $region16: #{conv_transpose_tanh.1} parent=11 // pred_fallthru
        _
    $region12: #{conv_transpose_tanh.1} parent=5 // pred_fallthru
      _
    %p99 = scmp.lt.s32.totalorder %s8, 4
    // Predicated region
    $region17: #{conv_transpose_tanh.1} parent=5 // pred_check
      %p100 = pneg %p99
    $region18: #{conv_transpose_tanh.1} parent=5 // pred_check_branch
      %102 = sbr.rel (%p100) target = $region20
    $region19: #{conv_transpose_tanh.1} parent=5 // pred_region
      // Predicated region
      $region21: #{conv_transpose_tanh.1} parent=19 // pred_check
        %p103 = pneg %p28
      $region22: #{conv_transpose_tanh.1} parent=19 // pred_check_branch
        %105 = sbr.rel (%p103) target = $region24
      $region23: #{conv_transpose_tanh.1} parent=19 // pred_region
        %s106 = smul.u32 7, %s8
        %p107 = scmp.lt.s32.totalorder %s106, 27
        %s108 = scalar_select %p107, %s106, 27
        %s109 = smul.addr %s108, 4
        %s110 = scalar_lea.vmem %s0, %s109
        %s111 = smul.u32 7, %s8
      $region24: #{conv_transpose_tanh.1} parent=19 // pred_fallthru
        _
    $region20: #{conv_transpose_tanh.1} parent=5 // pred_fallthru
      _
    %p112 = scmp.le.s32.totalorder 1, %s8
    %p113 = scmp.lt.s32.totalorder %s8, 5
    %p114 = pnand %p112, %p113
    %p115 = pneg %p114
    // Predicated region
    $region25: #{conv_transpose_tanh.1} parent=5 // pred_check
      _
    $region26: #{conv_transpose_tanh.1} parent=5 // pred_check_branch
      %117 = sbr.rel (%p114) target = $region28
    $region27: #{conv_transpose_tanh.1} parent=5 // pred_region
      %s118 = ssub.s32 %s8, 1
      %s119 = smul.u32 7, %s13
      %p120 = scmp.lt.s32.totalorder %s119, 27
      %s121 = scalar_select %p120, %s119, 27
      %s122 = smul.addr %s121, 4
      %s123 = scalar_lea.vmem %s0, %s122
      %p124 = pneg %p34
      %p125 = pneg %p31
      %p126 = pneg %p55
      %p127 = pneg %p52
      %p128 = pneg %p81
      %p129 = pneg %p78
      %s130 = smul.u32 7, %s13
      %p131 = scmp.lt.s32.totalorder %s130, 27
      %s132 = scalar_select %p131, %s130, 27
      %s133 = smul.addr %s132, 20
      %s134 = smul.addr %s133, 4
      %s135 = scalar_lea.vmem %s2, %s134
      %s136 = smul.u32 7, %s13
      %p137 = scmp.lt.s32.totalorder %s136, 27
      %s138 = scalar_select %p137, %s136, 27
      %s139 = smul.addr %s138, 4
      %s140 = scalar_lea.vmem %s0, %s139
      %s141 = smul.u32 7, %s13
      %s142 = smul.u32 7, %s13
      %p143 = scmp.lt.s32.totalorder %s142, 27
      %s144 = scalar_select %p143, %s142, 27
      %s145 = smul.addr %s144, 20
      %s146 = smul.addr %s145, 4
      %s147 = scalar_lea.vmem %s2, %s146
      %s148 = smul.u32 7, %s13
      %v150 = vld [vmem:[%s140] sm:$0xf]
      %v151 = vld [vmem:[%s140 + $0x4] sm:$0xf]
      %v152 = vld [vmem:[%s140 + $0x8] sm:$0xf]
      %v153 = vld [vmem:[%s140 + $0xc] sm:$0xf]
      %v154 = vld [vmem:[%s140 + $0x10] sm:$0xf]
      %v155 = vld [vmem:[%s140 + $0x14] sm:$0xf]
      %v156 = vld [vmem:[%s140 + $0x18] sm:$0xf]
      %v157 = vld [vmem:[%s1] sm:$0xff]
      %v158 = vld [vmem:[%s1 + $0x8] sm:$0xff]
      %v159 = vld [vmem:[%s1 + $0x10] sm:$0xff]
      %v160 = vld [vmem:[%s1 + $0x18] sm:$0xff]
      %v161 = vld [vmem:[%s1 + $0x20] sm:$0xff]
      %v162 = vld [vmem:[%s1 + $0x28] sm:$0xff]
      %v163 = vld [vmem:[%s1 + $0x30] sm:$0xff]
      %v164 = vld [vmem:[%s1 + $0x38] sm:$0xff]
      %v165 = vld [vmem:[%s1 + $0x40] sm:$0xff]
      %v166 = vld [vmem:[%s1 + $0x48] sm:$0xff]
      %v167 = vld [vmem:[%s1 + $0x50] sm:$0xff]
      %v168 = vld [vmem:[%s1 + $0x58] sm:$0xff]
      %v169 = vld [vmem:[%s1 + $0x60] sm:$0xff]
      %v170 = vld [vmem:[%s1 + $0x68] sm:$0xff]
      %v171 = vld [vmem:[%s1 + $0x70] sm:$0xff]
      %v172 = vld [vmem:[%s1 + $0x78] sm:$0xff]
      %v173 = vld [vmem:[%s1 + $0x80] sm:$0xff]
      %v174 = vld [vmem:[%s1 + $0x88] sm:$0xff]
      %v175 = vld [vmem:[%s1 + $0x90] sm:$0xff]
      %v176 = vld [vmem:[%s1 + $0x98] sm:$0xff]
      %v177 = vld [vmem:[%s1 + $0xa0] sm:$0xff]
      %v178 = vld [vmem:[%s1 + $0xa8] sm:$0xff]
      %v179 = vld [vmem:[%s1 + $0xb0] sm:$0xff]
      %v180 = vld [vmem:[%s1 + $0xb8] sm:$0xff]
      %v181 = vld [vmem:[%s1 + $0xc0] sm:$0xff]
      %v182 = vld [vmem:[%s1 + $0xc8] sm:$0xff]
      %v183 = vld [vmem:[%s1 + $0xd0] sm:$0xff]
      %v184 = vld [vmem:[%s1 + $0xd8] sm:$0xff]
      %v185 = vld [vmem:[%s1 + $0xe0] sm:$0xff]
      %v186 = vld [vmem:[%s1 + $0xe8] sm:$0xff]
      %v187 = vld [vmem:[%s1 + $0xf0] sm:$0xff]
      %v188 = vld [vmem:[%s1 + $0xf8] sm:$0xff]
      %v189 = vld [vmem:[%s1 + $0x100] sm:$0xff]
      %v190 = vld [vmem:[%s1 + $0x108] sm:$0xff]
      %v191 = vld [vmem:[%s1 + $0x110] sm:$0xff]
      %v192 = vld [vmem:[%s1 + $0x118] sm:$0xff]
      %v193 = vld [vmem:[%s1 + $0x120] sm:$0xff]
      %v194 = vld [vmem:[%s1 + $0x128] sm:$0xff]
      %v195 = vld [vmem:[%s1 + $0x130] sm:$0xff]
      %v196 = vld [vmem:[%s1 + $0x138] sm:$0xff]
      %v197 = vld [vmem:[%s1 + $0x140] sm:$0xff]
      %v198 = vld [vmem:[%s1 + $0x148] sm:$0xff]
      %v199 = vld [vmem:[%s1 + $0x150] sm:$0xff]
      %v200 = vld [vmem:[%s1 + $0x158] sm:$0xff]
      %v201 = vld [vmem:[%s1 + $0x160] sm:$0xff]
      %v202 = vld [vmem:[%s1 + $0x168] sm:$0xff]
      %v203 = vld [vmem:[%s1 + $0x170] sm:$0xff]
      %v204 = vld [vmem:[%s1 + $0x178] sm:$0xff]
      %v205 = vld [vmem:[%s1 + $0x180] sm:$0xff]
      %v206 = vld [vmem:[%s1 + $0x188] sm:$0xff]
      %v207 = vld [vmem:[%s1 + $0x190] sm:$0x11]
      %v208 = vld [vmem:[%s1 + $0x198] sm:$0x11]
      %v209 = vld [vmem:[%s1 + $0x1a0] sm:$0x11]
      %v210 = vld [vmem:[%s1 + $0x1a8] sm:$0x11]
      %v211 = vld [vmem:[%s1 + $0x1b0] sm:$0x11]
      %v212 = vld [vmem:[%s1 + $0x1b8] sm:$0x11]
      %v213 = vld [vmem:[%s1 + $0x1c0] sm:$0x11]
      %v214 = vld [vmem:[%s1 + $0x1c8] sm:$0x11]
      %v215 = vld [vmem:[%s1 + $0x1d0] sm:$0x11]
      %v216 = vld [vmem:[%s1 + $0x1d8] sm:$0x11]
      %v224 = vunpack.c.l.b16 %v150
      %v225 = vunpack.c.l.b16 %v151
      %v226 = vunpack.c.l.b16 %v152
      %v227 = vunpack.c.l.b16 %v153
      %v228 = vunpack.c.l.b16 %v154
      %v229 = vunpack.c.l.b16 %v155
      %v230 = vunpack.c.l.b16 %v156
      %v231 = vpack.c.b16 %v225, %v224
      %v232 = vpack.c.b16 %v227, %v226
      %v233 = vpack.c.b16 %v229, %v228
      %v234 = vpack.c.b16 %v230, %v230
      %v295 = vunpack.c.l.b16 %v157
      %v296 = vunpack.c.h.b16 %v157
      %v297 = vunpack.c.l.b16 %v158
      %v298 = vunpack.c.h.b16 %v158
      %v299 = vunpack.c.l.b16 %v159
      %v300 = vunpack.c.h.b16 %v159
      %v301 = vunpack.c.l.b16 %v160
      %v302 = vunpack.c.h.b16 %v160
      %v303 = vunpack.c.l.b16 %v161
      %v304 = vunpack.c.h.b16 %v161
      %v305 = vunpack.c.l.b16 %v162
      %v306 = vunpack.c.h.b16 %v162
      %v307 = vunpack.c.l.b16 %v163
      %v308 = vunpack.c.h.b16 %v163
      %v309 = vunpack.c.l.b16 %v164
      %v310 = vunpack.c.h.b16 %v164
      %v311 = vunpack.c.l.b16 %v165
      %v312 = vunpack.c.h.b16 %v165
      %v313 = vunpack.c.l.b16 %v166
      %v314 = vunpack.c.h.b16 %v166
      %v315 = vunpack.c.l.b16 %v167
      %v316 = vunpack.c.h.b16 %v167
      %v317 = vunpack.c.l.b16 %v168
      %v318 = vunpack.c.h.b16 %v168
      %v319 = vunpack.c.l.b16 %v169
      %v320 = vunpack.c.h.b16 %v169
      %v321 = vunpack.c.l.b16 %v170
      %v322 = vunpack.c.h.b16 %v170
      %v323 = vunpack.c.l.b16 %v171
      %v324 = vunpack.c.h.b16 %v171
      %v325 = vunpack.c.l.b16 %v172
      %v326 = vunpack.c.h.b16 %v172
      %v327 = vunpack.c.l.b16 %v173
      %v328 = vunpack.c.h.b16 %v173
      %v329 = vunpack.c.l.b16 %v174
      %v330 = vunpack.c.h.b16 %v174
      %v331 = vunpack.c.l.b16 %v175
      %v332 = vunpack.c.h.b16 %v175
      %v333 = vunpack.c.l.b16 %v176
      %v334 = vunpack.c.h.b16 %v176
      %v335 = vunpack.c.l.b16 %v177
      %v336 = vunpack.c.h.b16 %v177
      %v337 = vunpack.c.l.b16 %v178
      %v338 = vunpack.c.h.b16 %v178
      %v339 = vunpack.c.l.b16 %v179
      %v340 = vunpack.c.h.b16 %v179
      %v341 = vunpack.c.l.b16 %v180
      %v342 = vunpack.c.h.b16 %v180
      %v343 = vunpack.c.l.b16 %v181
      %v344 = vunpack.c.h.b16 %v181
      %v345 = vunpack.c.l.b16 %v182
      %v346 = vunpack.c.h.b16 %v182
      %v347 = vunpack.c.l.b16 %v183
      %v348 = vunpack.c.h.b16 %v183
      %v349 = vunpack.c.l.b16 %v184
      %v350 = vunpack.c.h.b16 %v184
      %v351 = vunpack.c.l.b16 %v185
      %v352 = vunpack.c.h.b16 %v185
      %v353 = vunpack.c.l.b16 %v186
      %v354 = vunpack.c.h.b16 %v186
      %v355 = vunpack.c.l.b16 %v187
      %v356 = vunpack.c.h.b16 %v187
      %v357 = vunpack.c.l.b16 %v188
      %v358 = vunpack.c.h.b16 %v188
      %v359 = vunpack.c.l.b16 %v189
      %v360 = vunpack.c.h.b16 %v189
      %v361 = vunpack.c.l.b16 %v190
      %v362 = vunpack.c.h.b16 %v190
      %v363 = vunpack.c.l.b16 %v191
      %v364 = vunpack.c.h.b16 %v191
      %v365 = vunpack.c.l.b16 %v192
      %v366 = vunpack.c.h.b16 %v192
      %v367 = vunpack.c.l.b16 %v193
      %v368 = vunpack.c.h.b16 %v193
      %v369 = vunpack.c.l.b16 %v194
      %v370 = vunpack.c.h.b16 %v194
      %v371 = vunpack.c.l.b16 %v195
      %v372 = vunpack.c.h.b16 %v195
      %v373 = vunpack.c.l.b16 %v196
      %v374 = vunpack.c.h.b16 %v196
      %v375 = vunpack.c.l.b16 %v197
      %v376 = vunpack.c.h.b16 %v197
      %v377 = vunpack.c.l.b16 %v198
      %v378 = vunpack.c.h.b16 %v198
      %v379 = vunpack.c.l.b16 %v199
      %v380 = vunpack.c.h.b16 %v199
      %v381 = vunpack.c.l.b16 %v200
      %v382 = vunpack.c.h.b16 %v200
      %v383 = vunpack.c.l.b16 %v201
      %v384 = vunpack.c.h.b16 %v201
      %v385 = vunpack.c.l.b16 %v202
      %v386 = vunpack.c.h.b16 %v202
      %v387 = vunpack.c.l.b16 %v203
      %v388 = vunpack.c.h.b16 %v203
      %v389 = vunpack.c.l.b16 %v204
      %v390 = vunpack.c.h.b16 %v204
      %v391 = vunpack.c.l.b16 %v205
      %v392 = vunpack.c.h.b16 %v205
      %v393 = vunpack.c.l.b16 %v206
      %v394 = vunpack.c.h.b16 %v206
      %v395 = vunpack.c.l.b16 %v207
      %v396 = vunpack.c.h.b16 %v207
      %v397 = vunpack.c.l.b16 %v208
      %v398 = vunpack.c.h.b16 %v208
      %v399 = vunpack.c.l.b16 %v209
      %v400 = vunpack.c.h.b16 %v209
      %v401 = vunpack.c.l.b16 %v210
      %v402 = vunpack.c.h.b16 %v210
      %v403 = vunpack.c.l.b16 %v211
      %v404 = vunpack.c.h.b16 %v211
      %v405 = vunpack.c.l.b16 %v212
      %v406 = vunpack.c.h.b16 %v212
      %v407 = vunpack.c.l.b16 %v213
      %v408 = vunpack.c.h.b16 %v213
      %v409 = vunpack.c.l.b16 %v214
      %v410 = vunpack.c.h.b16 %v214
      %v411 = vunpack.c.l.b16 %v215
      %v412 = vunpack.c.h.b16 %v215
      %v413 = vunpack.c.l.b16 %v216
      %v414 = vunpack.c.h.b16 %v216
      %v415 = vpack.c.b16 %v315, %v295
      %v416 = vpack.c.b16 %v316, %v296
      %v417 = vpack.c.b16 %v317, %v297
      %v418 = vpack.c.b16 %v318, %v298
      %v419 = vpack.c.b16 %v319, %v299
      %v420 = vpack.c.b16 %v320, %v300
      %v421 = vpack.c.b16 %v321, %v301
      %v422 = vpack.c.b16 %v322, %v302
      %v423 = vpack.c.b16 %v323, %v303
      %v424 = vpack.c.b16 %v324, %v304
      %v425 = vpack.c.b16 %v325, %v305
      %v426 = vpack.c.b16 %v326, %v306
      %v427 = vpack.c.b16 %v327, %v307
      %v428 = vpack.c.b16 %v328, %v308
      %v429 = vpack.c.b16 %v329, %v309
      %v430 = vpack.c.b16 %v330, %v310
      %v431 = vpack.c.b16 %v331, %v311
      %v432 = vpack.c.b16 %v332, %v312
      %v433 = vpack.c.b16 %v333, %v313
      %v434 = vpack.c.b16 %v334, %v314
      %v435 = vpack.c.b16 %v355, %v335
      %v436 = vpack.c.b16 %v356, %v336
      %v437 = vpack.c.b16 %v357, %v337
      %v438 = vpack.c.b16 %v358, %v338
      %v439 = vpack.c.b16 %v359, %v339
      %v440 = vpack.c.b16 %v360, %v340
      %v441 = vpack.c.b16 %v361, %v341
      %v442 = vpack.c.b16 %v362, %v342
      %v443 = vpack.c.b16 %v363, %v343
      %v444 = vpack.c.b16 %v364, %v344
      %v445 = vpack.c.b16 %v365, %v345
      %v446 = vpack.c.b16 %v366, %v346
      %v447 = vpack.c.b16 %v367, %v347
      %v448 = vpack.c.b16 %v368, %v348
      %v449 = vpack.c.b16 %v369, %v349
      %v450 = vpack.c.b16 %v370, %v350
      %v451 = vpack.c.b16 %v371, %v351
      %v452 = vpack.c.b16 %v372, %v352
      %v453 = vpack.c.b16 %v373, %v353
      %v454 = vpack.c.b16 %v374, %v354
      %v455 = vpack.c.b16 %v395, %v375
      %v456 = vpack.c.b16 %v396, %v376
      %v457 = vpack.c.b16 %v397, %v377
      %v458 = vpack.c.b16 %v398, %v378
      %v459 = vpack.c.b16 %v399, %v379
      %v460 = vpack.c.b16 %v400, %v380
      %v461 = vpack.c.b16 %v401, %v381
      %v462 = vpack.c.b16 %v402, %v382
      %v463 = vpack.c.b16 %v403, %v383
      %v464 = vpack.c.b16 %v404, %v384
      %v465 = vpack.c.b16 %v405, %v385
      %v466 = vpack.c.b16 %v406, %v386
      %v467 = vpack.c.b16 %v407, %v387
      %v468 = vpack.c.b16 %v408, %v388
      %v469 = vpack.c.b16 %v409, %v389
      %v470 = vpack.c.b16 %v410, %v390
      %v471 = vpack.c.b16 %v411, %v391
      %v472 = vpack.c.b16 %v412, %v392
      %v473 = vpack.c.b16 %v413, %v393
      %v474 = vpack.c.b16 %v414, %v394
      %vm515 = vcmask 334848
      %v517 = vsel %vm515, %v231, 0
      %v520 = vsel %vm515, %v232, 0
      %v523 = vsel %vm515, %v233, 0
      %v526 = vsel %vm515, %v234, 0
      %vm528 = vcmask 1043456
      %vm529 = vcmask 1044480
      %v530 = vsel %vm528, 4294967295, 65535
      %v531 = vsel %vm529, %v530, 0
      %v533 = vand.u32 %v455, %v531
      %v536 = vand.u32 %v456, %v531
      %v539 = vand.u32 %v457, %v531
      %v542 = vand.u32 %v458, %v531
      %v545 = vand.u32 %v459, %v531
      %v548 = vand.u32 %v460, %v531
      %v551 = vand.u32 %v461, %v531
      %v554 = vand.u32 %v462, %v531
      %v557 = vand.u32 %v463, %v531
      %v560 = vand.u32 %v464, %v531
      %v563 = vand.u32 %v465, %v531
      %v566 = vand.u32 %v466, %v531
      %v569 = vand.u32 %v467, %v531
      %v572 = vand.u32 %v468, %v531
      %v575 = vand.u32 %v469, %v531
      %v578 = vand.u32 %v470, %v531
      %v581 = vand.u32 %v471, %v531
      %v584 = vand.u32 %v472, %v531
      %v587 = vand.u32 %v473, %v531
      %v590 = vand.u32 %v474, %v531
      %592 = vmatprep.subr.bf16.mxu0 %v416
      %593 = vmatpush1.bf16.msra.mxu0 %v415
      %594 = vmatprep.subr.bf16.mxu0 %v436
      %595 = vmatpush1.bf16.msra.mxu0 %v435
      %596 = vmatprep.subr.bf16.mxu0 %v536
      %597 = vmatpush1.bf16.msra.mxu0 %v533
      %598 = vmatprep.subr.bf16.mxu0 0
      %599 = vmatpush1.bf16.msra.mxu0 0
      %600 = vmatprep.subr.bf16.mxu0 0
      %601 = vmatpush1.bf16.msra.mxu0 0
      %602 = vmatprep.subr.bf16.mxu0 0
      %603 = vmatpush1.bf16.msra.mxu0 0
      %604 = vmatprep.subr.bf16.mxu0 0
      %605 = vmatpush1.bf16.msra.mxu0 0
      %606 = vmatprep.subr.bf16.mxu0 0
      %607 = vmatpush1.bf16.msra.mxu0 0
      %608 = vmatprep.subr.bf16.mxu0 0
      %609 = vmatpush1.bf16.msra.mxu0 0
      %610 = vmatprep.subr.bf16.mxu0 0
      %611 = vmatpush1.bf16.msra.mxu0 0
      %612 = vmatprep.subr.bf16.mxu0 0
      %613 = vmatpush1.bf16.msra.mxu0 0
      %614 = vmatprep.subr.bf16.mxu0 0
      %615 = vmatpush1.bf16.msra.mxu0 0
      %616 = vmatprep.subr.bf16.mxu0 0
      %617 = vmatpush1.bf16.msra.mxu0 0
      %618 = vmatprep.subr.bf16.mxu0 0
      %619 = vmatpush1.bf16.msra.mxu0 0
      %620 = vmatprep.subr.bf16.mxu0 0
      %621 = vmatpush1.bf16.msra.mxu0 0
      %622 = vmatprep.subr.bf16.mxu0 0
      %623 = vmatpush1.bf16.msra.mxu0 0
      %624 = vmatprep.mubr.bf16.mxu0 0
      %625 = vmatmul.mubr.bf16.gmra.mrb[0].mxu0 %v517
      %v626 = vpop.f32.mrb[0].mxu0
      %v627 = vadd.f32 0.0, %v626
      %v628 = vpop.f32.mrb[0].mxu0
      %v629 = vadd.f32 0.0, %v628
      %v630 = vpop.f32.mrb[0].mxu0
      %v631 = vadd.f32 0.0, %v630
      %v632 = vpop.f32.mrb[0].mxu0
      %v633 = vadd.f32 0.0, %v632
      %634 = vmatprep.mubr.bf16.mxu0 0
      %635 = vmatmul.mubr.bf16.gmra.mrb[0].mxu0 %v520
      %v636 = vpop.f32.mrb[0].mxu0
      %v637 = vadd.f32 0.0, %v636
      %v638 = vpop.f32.mrb[0].mxu0
      %v639 = vadd.f32 0.0, %v638
      %v640 = vpop.f32.mrb[0].mxu0
      %v641 = vadd.f32 0.0, %v640
      %v642 = vpop.f32.mrb[0].mxu0
      %v643 = vadd.f32 0.0, %v642
      %644 = vmatprep.mubr.bf16.mxu0 0
      %645 = vmatmul.mubr.bf16.gmra.mrb[0].mxu0 %v523
      %v646 = vpop.f32.mrb[0].mxu0
      %v647 = vadd.f32 0.0, %v646
      %v648 = vpop.f32.mrb[0].mxu0
      %v649 = vadd.f32 0.0, %v648
      %v650 = vpop.f32.mrb[0].mxu0
      %v651 = vadd.f32 0.0, %v650
      %v652 = vpop.f32.mrb[0].mxu0
      %v653 = vadd.f32 0.0, %v652
      %654 = vmatprep.mubr.bf16.mxu0 0
      %655 = vmatmul.mubr.bf16.gmra.mrb[0].mxu0 %v526
      %v656 = vpop.f32.mrb[0].mxu0
      %v657 = vadd.f32 0.0, %v656
      %v658 = vpop.f32.mrb[0].mxu0
      %v659 = vadd.f32 0.0, %v658
      %v660 = vpop.f32.mrb[0].mxu0
      %v661 = vpop.f32.mrb[0].mxu0
      %662 = vdwg.mxu0
      %663 = vmatprep.subr.bf16.mxu0 %v418
      %664 = vmatpush1.bf16.msra.mxu0 %v417
      %665 = vmatprep.subr.bf16.mxu0 %v438
      %666 = vmatpush1.bf16.msra.mxu0 %v437
      %667 = vmatprep.subr.bf16.mxu0 %v542
      %668 = vmatpush1.bf16.msra.mxu0 %v539
      %669 = vmatprep.subr.bf16.mxu0 0
      %670 = vmatpush1.bf16.msra.mxu0 0
      %671 = vmatprep.subr.bf16.mxu0 0
      %672 = vmatpush1.bf16.msra.mxu0 0
      %673 = vmatprep.subr.bf16.mxu0 0
      %674 = vmatpush1.bf16.msra.mxu0 0
      %675 = vmatprep.subr.bf16.mxu0 0
      %676 = vmatpush1.bf16.msra.mxu0 0
      %677 = vmatprep.subr.bf16.mxu0 0
      %678 = vmatpush1.bf16.msra.mxu0 0
      %679 = vmatprep.subr.bf16.mxu0 0
      %680 = vmatpush1.bf16.msra.mxu0 0
      %681 = vmatprep.subr.bf16.mxu0 0
      %682 = vmatpush1.bf16.msra.mxu0 0
      %683 = vmatprep.subr.bf16.mxu0 0
      %684 = vmatpush1.bf16.msra.mxu0 0
      %685 = vmatprep.subr.bf16.mxu0 0
      %686 = vmatpush1.bf16.msra.mxu0 0
      %687 = vmatprep.subr.bf16.mxu0 0
      %688 = vmatpush1.bf16.msra.mxu0 0
      %689 = vmatprep.subr.bf16.mxu0 0
      %690 = vmatpush1.bf16.msra.mxu0 0
      %691 = vmatprep.subr.bf16.mxu0 0
      %692 = vmatpush1.bf16.msra.mxu0 0
      %693 = vmatprep.subr.bf16.mxu0 0
      %694 = vmatpush1.bf16.msra.mxu0 0
      %695 = vmatprep.mubr.bf16.mxu0 0
      %696 = vmatmul.mubr.bf16.gmra.mrb[0].mxu0 %v517
      %v697 = vpop.f32.mrb[0].mxu0
      %v698 = vadd.f32 0.0, %v697
      %v699 = vpop.f32.mrb[0].mxu0
      %v700 = vadd.f32 0.0, %v699
      %v701 = vpop.f32.mrb[0].mxu0
      %v702 = vadd.f32 0.0, %v701
      %v703 = vpop.f32.mrb[0].mxu0
      %v704 = vadd.f32 0.0, %v703
      %705 = vmatprep.mubr.bf16.mxu0 0
      %706 = vmatmul.mubr.bf16.gmra.mrb[0].mxu0 %v520
      %v707 = vpop.f32.mrb[0].mxu0
      %v708 = vadd.f32 0.0, %v707
      %v709 = vpop.f32.mrb[0].mxu0
      %v710 = vadd.f32 0.0, %v709
      %v711 = vpop.f32.mrb[0].mxu0
      %v712 = vadd.f32 0.0, %v711
      %v713 = vpop.f32.mrb[0].mxu0
      %v714 = vadd.f32 0.0, %v713
      %715 = vmatprep.mubr.bf16.mxu0 0
      %716 = vmatmul.mubr.bf16.gmra.mrb[0].mxu0 %v523
      %v717 = vpop.f32.mrb[0].mxu0
      %v718 = vadd.f32 0.0, %v717
      %v719 = vpop.f32.mrb[0].mxu0
      %v720 = vadd.f32 0.0, %v719
      %v721 = vpop.f32.mrb[0].mxu0
      %v722 = vadd.f32 0.0, %v721
      %v723 = vpop.f32.mrb[0].mxu0
      %v724 = vadd.f32 0.0, %v723
      %725 = vmatprep.mubr.bf16.mxu0 0
      %726 = vmatmul.mubr.bf16.gmra.mrb[0].mxu0 %v526
      %v727 = vpop.f32.mrb[0].mxu0
      %v728 = vadd.f32 0.0, %v727
      %v729 = vpop.f32.mrb[0].mxu0
      %v730 = vadd.f32 0.0, %v729
      %v731 = vpop.f32.mrb[0].mxu0
      %v732 = vpop.f32.mrb[0].mxu0
      %733 = vdwg.mxu0
      %734 = vmatprep.subr.bf16.mxu0 %v420
      %735 = vmatpush1.bf16.msra.mxu0 %v419
      %736 = vmatprep.subr.bf16.mxu0 %v440
      %737 = vmatpush1.bf16.msra.mxu0 %v439
      %738 = vmatprep.subr.bf16.mxu0 %v548
      %739 = vmatpush1.bf16.msra.mxu0 %v545
      %740 = vmatprep.subr.bf16.mxu0 0
      %741 = vmatpush1.bf16.msra.mxu0 0
      %742 = vmatprep.subr.bf16.mxu0 0
      %743 = vmatpush1.bf16.msra.mxu0 0
      %744 = vmatprep.subr.bf16.mxu0 0
      %745 = vmatpush1.bf16.msra.mxu0 0
      %746 = vmatprep.subr.bf16.mxu0 0
      %747 = vmatpush1.bf16.msra.mxu0 0
      %748 = vmatprep.subr.bf16.mxu0 0
      %749 = vmatpush1.bf16.msra.mxu0 0
      %750 = vmatprep.subr.bf16.mxu0 0
      %751 = vmatpush1.bf16.msra.mxu0 0
      %752 = vmatprep.subr.bf16.mxu0 0
      %753 = vmatpush1.bf16.msra.mxu0 0
      %754 = vmatprep.subr.bf16.mxu0 0
      %755 = vmatpush1.bf16.msra.mxu0 0
      %756 = vmatprep.subr.bf16.mxu0 0
      %757 = vmatpush1.bf16.msra.mxu0 0
      %758 = vmatprep.subr.bf16.mxu0 0
      %759 = vmatpush1.bf16.msra.mxu0 0
      %760 = vmatprep.subr.bf16.mxu0 0
      %761 = vmatpush1.bf16.msra.mxu0 0
      %762 = vmatprep.subr.bf16.mxu0 0
      %763 = vmatpush1.bf16.msra.mxu0 0
      %764 = vmatprep.subr.bf16.mxu0 0
      %765 = vmatpush1.bf16.msra.mxu0 0
      %766 = vmatprep.mubr.bf16.mxu0 0
      %767 = vmatmul.mubr.bf16.gmra.mrb[0].mxu0 %v517
      %v768 = vpop.f32.mrb[0].mxu0
      %v769 = vadd.f32 0.0, %v768
      %v770 = vpop.f32.mrb[0].mxu0
      %v771 = vadd.f32 0.0, %v770
      %v772 = vpop.f32.mrb[0].mxu0
      %v773 = vadd.f32 0.0, %v772
      %v774 = vpop.f32.mrb[0].mxu0
      %v775 = vadd.f32 0.0, %v774
      %776 = vmatprep.mubr.bf16.mxu0 0
      %777 = vmatmul.mubr.bf16.gmra.mrb[0].mxu0 %v520
      %v778 = vpop.f32.mrb[0].mxu0
      %v779 = vadd.f32 0.0, %v778
      %v780 = vpop.f32.mrb[0].mxu0
      %v781 = vadd.f32 0.0, %v780
      %v782 = vpop.f32.mrb[0].mxu0
      %v783 = vadd.f32 0.0, %v782
      %v784 = vpop.f32.mrb[0].mxu0
      %v785 = vadd.f32 0.0, %v784
      %786 = vmatprep.mubr.bf16.mxu0 0
      %787 = vmatmul.mubr.bf16.gmra.mrb[0].mxu0 %v523
      %v788 = vpop.f32.mrb[0].mxu0
      %v789 = vadd.f32 0.0, %v788
      %v790 = vpop.f32.mrb[0].mxu0
      %v791 = vadd.f32 0.0, %v790
      %v792 = vpop.f32.mrb[0].mxu0
      %v793 = vadd.f32 0.0, %v792
      %v794 = vpop.f32.mrb[0].mxu0
      %v795 = vadd.f32 0.0, %v794
      %796 = vmatprep.mubr.bf16.mxu0 0
      %797 = vmatmul.mubr.bf16.gmra.mrb[0].mxu0 %v526
      %v798 = vpop.f32.mrb[0].mxu0
      %v799 = vadd.f32 0.0, %v798
      %v800 = vpop.f32.mrb[0].mxu0
      %v801 = vadd.f32 0.0, %v800
      %v802 = vpop.f32.mrb[0].mxu0
      %v803 = vpop.f32.mrb[0].mxu0
      %804 = vdwg.mxu0
      %805 = vmatprep.subr.bf16.mxu0 %v422
      %806 = vmatpush1.bf16.msra.mxu0 %v421
      %807 = vmatprep.subr.bf16.mxu0 %v442
      %808 = vmatpush1.bf16.msra.mxu0 %v441
      %809 = vmatprep.subr.bf16.mxu0 %v554
      %810 = vmatpush1.bf16.msra.mxu0 %v551
      %811 = vmatprep.subr.bf16.mxu0 0
      %812 = vmatpush1.bf16.msra.mxu0 0
      %813 = vmatprep.subr.bf16.mxu0 0
      %814 = vmatpush1.bf16.msra.mxu0 0
      %815 = vmatprep.subr.bf16.mxu0 0
      %816 = vmatpush1.bf16.msra.mxu0 0
      %817 = vmatprep.subr.bf16.mxu0 0
      %818 = vmatpush1.bf16.msra.mxu0 0
      %819 = vmatprep.subr.bf16.mxu0 0
      %820 = vmatpush1.bf16.msra.mxu0 0
      %821 = vmatprep.subr.bf16.mxu0 0
      %822 = vmatpush1.bf16.msra.mxu0 0
      %823 = vmatprep.subr.bf16.mxu0 0
      %824 = vmatpush1.bf16.msra.mxu0 0
      %825 = vmatprep.subr.bf16.mxu0 0
      %826 = vmatpush1.bf16.msra.mxu0 0
      %827 = vmatprep.subr.bf16.mxu0 0
      %828 = vmatpush1.bf16.msra.mxu0 0
      %829 = vmatprep.subr.bf16.mxu0 0
      %830 = vmatpush1.bf16.msra.mxu0 0
      %831 = vmatprep.subr.bf16.mxu0 0
      %832 = vmatpush1.bf16.msra.mxu0 0
      %833 = vmatprep.subr.bf16.mxu0 0
      %834 = vmatpush1.bf16.msra.mxu0 0
      %835 = vmatprep.subr.bf16.mxu0 0
      %836 = vmatpush1.bf16.msra.mxu0 0
      %837 = vmatprep.mubr.bf16.mxu0 0
      %838 = vmatmul.mubr.bf16.gmra.mrb[0].mxu0 %v517
      %v839 = vpop.f32.mrb[0].mxu0
      %v840 = vadd.f32 0.0, %v839
      %v841 = vpop.f32.mrb[0].mxu0
      %v842 = vadd.f32 0.0, %v841
      %v843 = vpop.f32.mrb[0].mxu0
      %v844 = vadd.f32 0.0, %v843
      %v845 = vpop.f32.mrb[0].mxu0
      %v846 = vadd.f32 0.0, %v845
      %847 = vmatprep.mubr.bf16.mxu0 0
      %848 = vmatmul.mubr.bf16.gmra.mrb[0].mxu0 %v520
      %v849 = vpop.f32.mrb[0].mxu0
      %v850 = vadd.f32 0.0, %v849
      %v851 = vpop.f32.mrb[0].mxu0
      %v852 = vadd.f32 0.0, %v851
      %v853 = vpop.f32.mrb[0].mxu0
      %v854 = vadd.f32 0.0, %v853
      %v855 = vpop.f32.mrb[0].mxu0
      %v856 = vadd.f32 0.0, %v855
      %857 = vmatprep.mubr.bf16.mxu0 0
      %858 = vmatmul.mubr.bf16.gmra.mrb[0].mxu0 %v523
      %v859 = vpop.f32.mrb[0].mxu0
      %v860 = vadd.f32 0.0, %v859
      %v861 = vpop.f32.mrb[0].mxu0
      %v862 = vadd.f32 0.0, %v861
      %v863 = vpop.f32.mrb[0].mxu0
      %v864 = vadd.f32 0.0, %v863
      %v865 = vpop.f32.mrb[0].mxu0
      %v866 = vadd.f32 0.0, %v865
      %867 = vmatprep.mubr.bf16.mxu0 0
      %868 = vmatmul.mubr.bf16.gmra.mrb[0].mxu0 %v526
      %v869 = vpop.f32.mrb[0].mxu0
      %v870 = vadd.f32 0.0, %v869
      %v871 = vpop.f32.mrb[0].mxu0
      %v872 = vadd.f32 0.0, %v871
      %v873 = vpop.f32.mrb[0].mxu0
      %v874 = vpop.f32.mrb[0].mxu0
      %875 = vdwg.mxu0
      %876 = vmatprep.subr.bf16.mxu0 %v424
      %877 = vmatpush1.bf16.msra.mxu0 %v423
      %878 = vmatprep.subr.bf16.mxu0 %v444
      %879 = vmatpush1.bf16.msra.mxu0 %v443
      %880 = vmatprep.subr.bf16.mxu0 %v560
      %881 = vmatpush1.bf16.msra.mxu0 %v557
      %882 = vmatprep.subr.bf16.mxu0 0
      %883 = vmatpush1.bf16.msra.mxu0 0
      %884 = vmatprep.subr.bf16.mxu0 0
      %885 = vmatpush1.bf16.msra.mxu0 0
      %886 = vmatprep.subr.bf16.mxu0 0
      %887 = vmatpush1.bf16.msra.mxu0 0
      %888 = vmatprep.subr.bf16.mxu0 0
      %889 = vmatpush1.bf16.msra.mxu0 0
      %890 = vmatprep.subr.bf16.mxu0 0
      %891 = vmatpush1.bf16.msra.mxu0 0
      %892 = vmatprep.subr.bf16.mxu0 0
      %893 = vmatpush1.bf16.msra.mxu0 0
      %894 = vmatprep.subr.bf16.mxu0 0
      %895 = vmatpush1.bf16.msra.mxu0 0
      %896 = vmatprep.subr.bf16.mxu0 0
      %897 = vmatpush1.bf16.msra.mxu0 0
      %898 = vmatprep.subr.bf16.mxu0 0
      %899 = vmatpush1.bf16.msra.mxu0 0
      %900 = vmatprep.subr.bf16.mxu0 0
      %901 = vmatpush1.bf16.msra.mxu0 0
      %902 = vmatprep.subr.bf16.mxu0 0
      %903 = vmatpush1.bf16.msra.mxu0 0
      %904 = vmatprep.subr.bf16.mxu0 0
      %905 = vmatpush1.bf16.msra.mxu0 0
      %906 = vmatprep.subr.bf16.mxu0 0
      %907 = vmatpush1.bf16.msra.mxu0 0
      %908 = vmatprep.mubr.bf16.mxu0 0
      %909 = vmatmul.mubr.bf16.gmra.mrb[0].mxu0 %v517
      %v910 = vpop.f32.mrb[0].mxu0
      %v911 = vadd.f32 0.0, %v910
      %v912 = vpop.f32.mrb[0].mxu0
      %v913 = vadd.f32 0.0, %v912
      %v914 = vpop.f32.mrb[0].mxu0
      %v915 = vadd.f32 0.0, %v914
      %v916 = vpop.f32.mrb[0].mxu0
      %v917 = vadd.f32 0.0, %v916
      %918 = vmatprep.mubr.bf16.mxu0 0
      %919 = vmatmul.mubr.bf16.gmra.mrb[0].mxu0 %v520
      %v920 = vpop.f32.mrb[0].mxu0
      %v921 = vadd.f32 0.0, %v920
      %v922 = vpop.f32.mrb[0].mxu0
      %v923 = vadd.f32 0.0, %v922
      %v924 = vpop.f32.mrb[0].mxu0
      %v925 = vadd.f32 0.0, %v924
      %v926 = vpop.f32.mrb[0].mxu0
      %v927 = vadd.f32 0.0, %v926
      %928 = vmatprep.mubr.bf16.mxu0 0
      %929 = vmatmul.mubr.bf16.gmra.mrb[0].mxu0 %v523
      %v930 = vpop.f32.mrb[0].mxu0
      %v931 = vadd.f32 0.0, %v930
      %v932 = vpop.f32.mrb[0].mxu0
      %v933 = vadd.f32 0.0, %v932
      %v934 = vpop.f32.mrb[0].mxu0
      %v935 = vadd.f32 0.0, %v934
      %v936 = vpop.f32.mrb[0].mxu0
      %v937 = vadd.f32 0.0, %v936
      %938 = vmatprep.mubr.bf16.mxu0 0
      %939 = vmatmul.mubr.bf16.gmra.mrb[0].mxu0 %v526
      %v940 = vpop.f32.mrb[0].mxu0
      %v941 = vadd.f32 0.0, %v940
      %v942 = vpop.f32.mrb[0].mxu0
      %v943 = vadd.f32 0.0, %v942
      %v944 = vpop.f32.mrb[0].mxu0
      %v945 = vpop.f32.mrb[0].mxu0
      %946 = vdwg.mxu0
      %947 = vmatprep.subr.bf16.mxu0 %v426
      %948 = vmatpush1.bf16.msra.mxu0 %v425
      %949 = vmatprep.subr.bf16.mxu0 %v446
      %950 = vmatpush1.bf16.msra.mxu0 %v445
      %951 = vmatprep.subr.bf16.mxu0 %v566
      %952 = vmatpush1.bf16.msra.mxu0 %v563
      %953 = vmatprep.subr.bf16.mxu0 0
      %954 = vmatpush1.bf16.msra.mxu0 0
      %955 = vmatprep.subr.bf16.mxu0 0
      %956 = vmatpush1.bf16.msra.mxu0 0
      %957 = vmatprep.subr.bf16.mxu0 0
      %958 = vmatpush1.bf16.msra.mxu0 0
      %959 = vmatprep.subr.bf16.mxu0 0
      %960 = vmatpush1.bf16.msra.mxu0 0
      %961 = vmatprep.subr.bf16.mxu0 0
      %962 = vmatpush1.bf16.msra.mxu0 0
      %963 = vmatprep.subr.bf16.mxu0 0
      %964 = vmatpush1.bf16.msra.mxu0 0
      %965 = vmatprep.subr.bf16.mxu0 0
      %966 = vmatpush1.bf16.msra.mxu0 0
      %967 = vmatprep.subr.bf16.mxu0 0
      %968 = vmatpush1.bf16.msra.mxu0 0
      %969 = vmatprep.subr.bf16.mxu0 0
      %970 = vmatpush1.bf16.msra.mxu0 0
      %971 = vmatprep.subr.bf16.mxu0 0
      %972 = vmatpush1.bf16.msra.mxu0 0
      %973 = vmatprep.subr.bf16.mxu0 0
      %974 = vmatpush1.bf16.msra.mxu0 0
      %975 = vmatprep.subr.bf16.mxu0 0
      %976 = vmatpush1.bf16.msra.mxu0 0
      %977 = vmatprep.subr.bf16.mxu0 0
      %978 = vmatpush1.bf16.msra.mxu0 0
      %979 = vmatprep.mubr.bf16.mxu0 0
      %980 = vmatmul.mubr.bf16.gmra.mrb[0].mxu0 %v517
      %v981 = vpop.f32.mrb[0].mxu0
      %v982 = vadd.f32 0.0, %v981
      %v983 = vpop.f32.mrb[0].mxu0
      %v984 = vadd.f32 0.0, %v983
      %v985 = vpop.f32.mrb[0].mxu0
      %v986 = vadd.f32 0.0, %v985
      %v987 = vpop.f32.mrb[0].mxu0
      %v988 = vadd.f32 0.0, %v987
      %989 = vmatprep.mubr.bf16.mxu0 0
      %990 = vmatmul.mubr.bf16.gmra.mrb[0].mxu0 %v520
      %v991 = vpop.f32.mrb[0].mxu0
      %v992 = vadd.f32 0.0, %v991
      %v993 = vpop.f32.mrb[0].mxu0
      %v994 = vadd.f32 0.0, %v993
      %v995 = vpop.f32.mrb[0].mxu0
      %v996 = vadd.f32 0.0, %v995
      %v997 = vpop.f32.mrb[0].mxu0
      %v998 = vadd.f32 0.0, %v997
      %999 = vmatprep.mubr.bf16.mxu0 0
      %1000 = vmatmul.mubr.bf16.gmra.mrb[0].mxu0 %v523
      %v1001 = vpop.f32.mrb[0].mxu0
      %v1002 = vadd.f32 0.0, %v1001
      %v1003 = vpop.f32.mrb[0].mxu0
      %v1004 = vadd.f32 0.0, %v1003
      %v1005 = vpop.f32.mrb[0].mxu0
      %v1006 = vadd.f32 0.0, %v1005
      %v1007 = vpop.f32.mrb[0].mxu0
      %v1008 = vadd.f32 0.0, %v1007
      %1009 = vmatprep.mubr.bf16.mxu0 0
      %1010 = vmatmul.mubr.bf16.gmra.mrb[0].mxu0 %v526
      %v1011 = vpop.f32.mrb[0].mxu0
      %v1012 = vadd.f32 0.0, %v1011
      %v1013 = vpop.f32.mrb[0].mxu0
      %v1014 = vadd.f32 0.0, %v1013
      %v1015 = vpop.f32.mrb[0].mxu0
      %v1016 = vpop.f32.mrb[0].mxu0
      %1017 = vdwg.mxu0
      %1018 = vmatprep.subr.bf16.mxu0 %v428
      %1019 = vmatpush1.bf16.msra.mxu0 %v427
      %1020 = vmatprep.subr.bf16.mxu0 %v448
      %1021 = vmatpush1.bf16.msra.mxu0 %v447
      %1022 = vmatprep.subr.bf16.mxu0 %v572
      %1023 = vmatpush1.bf16.msra.mxu0 %v569
      %1024 = vmatprep.subr.bf16.mxu0 0
      %1025 = vmatpush1.bf16.msra.mxu0 0
      %1026 = vmatprep.subr.bf16.mxu0 0
      %1027 = vmatpush1.bf16.msra.mxu0 0
      %1028 = vmatprep.subr.bf16.mxu0 0
      %1029 = vmatpush1.bf16.msra.mxu0 0
      %1030 = vmatprep.subr.bf16.mxu0 0
      %1031 = vmatpush1.bf16.msra.mxu0 0
      %1032 = vmatprep.subr.bf16.mxu0 0
      %1033 = vmatpush1.bf16.msra.mxu0 0
      %1034 = vmatprep.subr.bf16.mxu0 0
      %1035 = vmatpush1.bf16.msra.mxu0 0
      %1036 = vmatprep.subr.bf16.mxu0 0
      %1037 = vmatpush1.bf16.msra.mxu0 0
      %1038 = vmatprep.subr.bf16.mxu0 0
      %1039 = vmatpush1.bf16.msra.mxu0 0
      %1040 = vmatprep.subr.bf16.mxu0 0
      %1041 = vmatpush1.bf16.msra.mxu0 0
      %1042 = vmatprep.subr.bf16.mxu0 0
      %1043 = vmatpush1.bf16.msra.mxu0 0
      %1044 = vmatprep.subr.bf16.mxu0 0
      %1045 = vmatpush1.bf16.msra.mxu0 0
      %1046 = vmatprep.subr.bf16.mxu0 0
      %1047 = vmatpush1.bf16.msra.mxu0 0
      %1048 = vmatprep.subr.bf16.mxu0 0
      %1049 = vmatpush1.bf16.msra.mxu0 0
      %1050 = vmatprep.mubr.bf16.mxu0 0
      %1051 = vmatmul.mubr.bf16.gmra.mrb[0].mxu0 %v517
      %v1052 = vpop.f32.mrb[0].mxu0
      %v1053 = vadd.f32 0.0, %v1052
      %v1054 = vpop.f32.mrb[0].mxu0
      %v1055 = vadd.f32 0.0, %v1054
      %v1056 = vpop.f32.mrb[0].mxu0
      %v1057 = vadd.f32 0.0, %v1056
      %v1058 = vpop.f32.mrb[0].mxu0
      %v1059 = vadd.f32 0.0, %v1058
      %1060 = vmatprep.mubr.bf16.mxu0 0
      %1061 = vmatmul.mubr.bf16.gmra.mrb[0].mxu0 %v520
      %v1062 = vpop.f32.mrb[0].mxu0
      %v1063 = vadd.f32 0.0, %v1062
      %v1064 = vpop.f32.mrb[0].mxu0
      %v1065 = vadd.f32 0.0, %v1064
      %v1066 = vpop.f32.mrb[0].mxu0
      %v1067 = vadd.f32 0.0, %v1066
      %v1068 = vpop.f32.mrb[0].mxu0
      %v1069 = vadd.f32 0.0, %v1068
      %1070 = vmatprep.mubr.bf16.mxu0 0
      %1071 = vmatmul.mubr.bf16.gmra.mrb[0].mxu0 %v523
      %v1072 = vpop.f32.mrb[0].mxu0
      %v1073 = vadd.f32 0.0, %v1072
      %v1074 = vpop.f32.mrb[0].mxu0
      %v1075 = vadd.f32 0.0, %v1074
      %v1076 = vpop.f32.mrb[0].mxu0
      %v1077 = vadd.f32 0.0, %v1076
      %v1078 = vpop.f32.mrb[0].mxu0
      %v1079 = vadd.f32 0.0, %v1078
      %1080 = vmatprep.mubr.bf16.mxu0 0
      %1081 = vmatmul.mubr.bf16.gmra.mrb[0].mxu0 %v526
      %v1082 = vpop.f32.mrb[0].mxu0
      %v1083 = vadd.f32 0.0, %v1082
      %v1084 = vpop.f32.mrb[0].mxu0
      %v1085 = vadd.f32 0.0, %v1084
      %v1086 = vpop.f32.mrb[0].mxu0
      %v1087 = vpop.f32.mrb[0].mxu0
      %1088 = vdwg.mxu0
      %1089 = vmatprep.subr.bf16.mxu0 %v430
      %1090 = vmatpush1.bf16.msra.mxu0 %v429
      %1091 = vmatprep.subr.bf16.mxu0 %v450
      %1092 = vmatpush1.bf16.msra.mxu0 %v449
      %1093 = vmatprep.subr.bf16.mxu0 %v578
      %1094 = vmatpush1.bf16.msra.mxu0 %v575
      %1095 = vmatprep.subr.bf16.mxu0 0
      %1096 = vmatpush1.bf16.msra.mxu0 0
      %1097 = vmatprep.subr.bf16.mxu0 0
      %1098 = vmatpush1.bf16.msra.mxu0 0
      %1099 = vmatprep.subr.bf16.mxu0 0
      %1100 = vmatpush1.bf16.msra.mxu0 0
      %1101 = vmatprep.subr.bf16.mxu0 0
      %1102 = vmatpush1.bf16.msra.mxu0 0
      %1103 = vmatprep.subr.bf16.mxu0 0
      %1104 = vmatpush1.bf16.msra.mxu0 0
      %1105 = vmatprep.subr.bf16.mxu0 0
      %1106 = vmatpush1.bf16.msra.mxu0 0
      %1107 = vmatprep.subr.bf16.mxu0 0
      %1108 = vmatpush1.bf16.msra.mxu0 0
      %1109 = vmatprep.subr.bf16.mxu0 0
      %1110 = vmatpush1.bf16.msra.mxu0 0
      %1111 = vmatprep.subr.bf16.mxu0 0
      %1112 = vmatpush1.bf16.msra.mxu0 0
      %1113 = vmatprep.subr.bf16.mxu0 0
      %1114 = vmatpush1.bf16.msra.mxu0 0
      %1115 = vmatprep.subr.bf16.mxu0 0
      %1116 = vmatpush1.bf16.msra.mxu0 0
      %1117 = vmatprep.subr.bf16.mxu0 0
      %1118 = vmatpush1.bf16.msra.mxu0 0
      %1119 = vmatprep.subr.bf16.mxu0 0
      %1120 = vmatpush1.bf16.msra.mxu0 0
      %1121 = vmatprep.mubr.bf16.mxu0 0
      %1122 = vmatmul.mubr.bf16.gmra.mrb[0].mxu0 %v517
      %v1123 = vpop.f32.mrb[0].mxu0
      %v1124 = vadd.f32 0.0, %v1123
      %v1125 = vpop.f32.mrb[0].mxu0
      %v1126 = vadd.f32 0.0, %v1125
      %v1127 = vpop.f32.mrb[0].mxu0
      %v1128 = vadd.f32 0.0, %v1127
      %v1129 = vpop.f32.mrb[0].mxu0
      %v1130 = vadd.f32 0.0, %v1129
      %1131 = vmatprep.mubr.bf16.mxu0 0
      %1132 = vmatmul.mubr.bf16.gmra.mrb[0].mxu0 %v520
      %v1133 = vpop.f32.mrb[0].mxu0
      %v1134 = vadd.f32 0.0, %v1133
      %v1135 = vpop.f32.mrb[0].mxu0
      %v1136 = vadd.f32 0.0, %v1135
      %v1137 = vpop.f32.mrb[0].mxu0
      %v1138 = vadd.f32 0.0, %v1137
      %v1139 = vpop.f32.mrb[0].mxu0
      %v1140 = vadd.f32 0.0, %v1139
      %1141 = vmatprep.mubr.bf16.mxu0 0
      %1142 = vmatmul.mubr.bf16.gmra.mrb[0].mxu0 %v523
      %v1143 = vpop.f32.mrb[0].mxu0
      %v1144 = vadd.f32 0.0, %v1143
      %v1145 = vpop.f32.mrb[0].mxu0
      %v1146 = vadd.f32 0.0, %v1145
      %v1147 = vpop.f32.mrb[0].mxu0
      %v1148 = vadd.f32 0.0, %v1147
      %v1149 = vpop.f32.mrb[0].mxu0
      %v1150 = vadd.f32 0.0, %v1149
      %1151 = vmatprep.mubr.bf16.mxu0 0
      %1152 = vmatmul.mubr.bf16.gmra.mrb[0].mxu0 %v526
      %v1153 = vpop.f32.mrb[0].mxu0
      %v1154 = vadd.f32 0.0, %v1153
      %v1155 = vpop.f32.mrb[0].mxu0
      %v1156 = vadd.f32 0.0, %v1155
      %v1157 = vpop.f32.mrb[0].mxu0
      %v1158 = vpop.f32.mrb[0].mxu0
      %1159 = vdwg.mxu0
      %1160 = vmatprep.subr.bf16.mxu0 %v432
      %1161 = vmatpush1.bf16.msra.mxu0 %v431
      %1162 = vmatprep.subr.bf16.mxu0 %v452
      %1163 = vmatpush1.bf16.msra.mxu0 %v451
      %1164 = vmatprep.subr.bf16.mxu0 %v584
      %1165 = vmatpush1.bf16.msra.mxu0 %v581
      %1166 = vmatprep.subr.bf16.mxu0 0
      %1167 = vmatpush1.bf16.msra.mxu0 0
      %1168 = vmatprep.subr.bf16.mxu0 0
      %1169 = vmatpush1.bf16.msra.mxu0 0
      %1170 = vmatprep.subr.bf16.mxu0 0
      %1171 = vmatpush1.bf16.msra.mxu0 0
      %1172 = vmatprep.subr.bf16.mxu0 0
      %1173 = vmatpush1.bf16.msra.mxu0 0
      %1174 = vmatprep.subr.bf16.mxu0 0
      %1175 = vmatpush1.bf16.msra.mxu0 0
      %1176 = vmatprep.subr.bf16.mxu0 0
      %1177 = vmatpush1.bf16.msra.mxu0 0
      %1178 = vmatprep.subr.bf16.mxu0 0
      %1179 = vmatpush1.bf16.msra.mxu0 0
      %1180 = vmatprep.subr.bf16.mxu0 0
      %1181 = vmatpush1.bf16.msra.mxu0 0
      %1182 = vmatprep.subr.bf16.mxu0 0
      %1183 = vmatpush1.bf16.msra.mxu0 0
      %1184 = vmatprep.subr.bf16.mxu0 0
      %1185 = vmatpush1.bf16.msra.mxu0 0
      %1186 = vmatprep.subr.bf16.mxu0 0
      %1187 = vmatpush1.bf16.msra.mxu0 0
      %1188 = vmatprep.subr.bf16.mxu0 0
      %1189 = vmatpush1.bf16.msra.mxu0 0
      %1190 = vmatprep.subr.bf16.mxu0 0
      %1191 = vmatpush1.bf16.msra.mxu0 0
      %1192 = vmatprep.mubr.bf16.mxu0 0
      %1193 = vmatmul.mubr.bf16.gmra.mrb[0].mxu0 %v517
      %v1194 = vpop.f32.mrb[0].mxu0
      %v1195 = vadd.f32 0.0, %v1194
      %v1196 = vpop.f32.mrb[0].mxu0
      %v1197 = vadd.f32 0.0, %v1196
      %v1198 = vpop.f32.mrb[0].mxu0
      %v1199 = vadd.f32 0.0, %v1198
      %v1200 = vpop.f32.mrb[0].mxu0
      %v1201 = vadd.f32 0.0, %v1200
      %1202 = vmatprep.mubr.bf16.mxu0 0
      %1203 = vmatmul.mubr.bf16.gmra.mrb[0].mxu0 %v520
      %v1204 = vpop.f32.mrb[0].mxu0
      %v1205 = vadd.f32 0.0, %v1204
      %v1206 = vpop.f32.mrb[0].mxu0
      %v1207 = vadd.f32 0.0, %v1206
      %v1208 = vpop.f32.mrb[0].mxu0
      %v1209 = vadd.f32 0.0, %v1208
      %v1210 = vpop.f32.mrb[0].mxu0
      %v1211 = vadd.f32 0.0, %v1210
      %1212 = vmatprep.mubr.bf16.mxu0 0
      %1213 = vmatmul.mubr.bf16.gmra.mrb[0].mxu0 %v523
      %v1214 = vpop.f32.mrb[0].mxu0
      %v1215 = vadd.f32 0.0, %v1214
      %v1216 = vpop.f32.mrb[0].mxu0
      %v1217 = vadd.f32 0.0, %v1216
      %v1218 = vpop.f32.mrb[0].mxu0
      %v1219 = vadd.f32 0.0, %v1218
      %v1220 = vpop.f32.mrb[0].mxu0
      %v1221 = vadd.f32 0.0, %v1220
      %1222 = vmatprep.mubr.bf16.mxu0 0
      %1223 = vmatmul.mubr.bf16.gmra.mrb[0].mxu0 %v526
      %v1224 = vpop.f32.mrb[0].mxu0
      %v1225 = vadd.f32 0.0, %v1224
      %v1226 = vpop.f32.mrb[0].mxu0
      %v1227 = vadd.f32 0.0, %v1226
      %v1228 = vpop.f32.mrb[0].mxu0
      %v1229 = vpop.f32.mrb[0].mxu0
      %1230 = vdwg.mxu0
      %1231 = vmatprep.subr.bf16.mxu0 %v434
      %1232 = vmatpush1.bf16.msra.mxu0 %v433
      %1233 = vmatprep.subr.bf16.mxu0 %v454
      %1234 = vmatpush1.bf16.msra.mxu0 %v453
      %1235 = vmatprep.subr.bf16.mxu0 %v590
      %1236 = vmatpush1.bf16.msra.mxu0 %v587
      %1237 = vmatprep.subr.bf16.mxu0 0
      %1238 = vmatpush1.bf16.msra.mxu0 0
      %1239 = vmatprep.subr.bf16.mxu0 0
      %1240 = vmatpush1.bf16.msra.mxu0 0
      %1241 = vmatprep.subr.bf16.mxu0 0
      %1242 = vmatpush1.bf16.msra.mxu0 0
      %1243 = vmatprep.subr.bf16.mxu0 0
      %1244 = vmatpush1.bf16.msra.mxu0 0
      %1245 = vmatprep.subr.bf16.mxu0 0
      %1246 = vmatpush1.bf16.msra.mxu0 0
      %1247 = vmatprep.subr.bf16.mxu0 0
      %1248 = vmatpush1.bf16.msra.mxu0 0
      %1249 = vmatprep.subr.bf16.mxu0 0
      %1250 = vmatpush1.bf16.msra.mxu0 0
      %1251 = vmatprep.subr.bf16.mxu0 0
      %1252 = vmatpush1.bf16.msra.mxu0 0
      %1253 = vmatprep.subr.bf16.mxu0 0
      %1254 = vmatpush1.bf16.msra.mxu0 0
      %1255 = vmatprep.subr.bf16.mxu0 0
      %1256 = vmatpush1.bf16.msra.mxu0 0
      %1257 = vmatprep.subr.bf16.mxu0 0
      %1258 = vmatpush1.bf16.msra.mxu0 0
      %1259 = vmatprep.subr.bf16.mxu0 0
      %1260 = vmatpush1.bf16.msra.mxu0 0
      %1261 = vmatprep.subr.bf16.mxu0 0
      %1262 = vmatpush1.bf16.msra.mxu0 0
      %1263 = vmatprep.mubr.bf16.mxu0 0
      %1264 = vmatmul.mubr.bf16.gmra.mrb[0].mxu0 %v517
      %v1265 = vpop.f32.mrb[0].mxu0
      %v1266 = vadd.f32 0.0, %v1265
      %v1267 = vpop.f32.mrb[0].mxu0
      %v1268 = vadd.f32 0.0, %v1267
      %v1269 = vpop.f32.mrb[0].mxu0
      %v1270 = vadd.f32 0.0, %v1269
      %v1271 = vpop.f32.mrb[0].mxu0
      %v1272 = vadd.f32 0.0, %v1271
      %1273 = vmatprep.mubr.bf16.mxu0 0
      %1274 = vmatmul.mubr.bf16.gmra.mrb[0].mxu0 %v520
      %v1275 = vpop.f32.mrb[0].mxu0
      %v1276 = vadd.f32 0.0, %v1275
      %v1277 = vpop.f32.mrb[0].mxu0
      %v1278 = vadd.f32 0.0, %v1277
      %v1279 = vpop.f32.mrb[0].mxu0
      %v1280 = vadd.f32 0.0, %v1279
      %v1281 = vpop.f32.mrb[0].mxu0
      %v1282 = vadd.f32 0.0, %v1281
      %1283 = vmatprep.mubr.bf16.mxu0 0
      %1284 = vmatmul.mubr.bf16.gmra.mrb[0].mxu0 %v523
      %v1285 = vpop.f32.mrb[0].mxu0
      %v1286 = vadd.f32 0.0, %v1285
      %v1287 = vpop.f32.mrb[0].mxu0
      %v1288 = vadd.f32 0.0, %v1287
      %v1289 = vpop.f32.mrb[0].mxu0
      %v1290 = vadd.f32 0.0, %v1289
      %v1291 = vpop.f32.mrb[0].mxu0
      %v1292 = vadd.f32 0.0, %v1291
      %1293 = vmatprep.mubr.bf16.mxu0 0
      %1294 = vmatmul.mubr.bf16.gmra.mrb[0].mxu0 %v526
      %v1295 = vpop.f32.mrb[0].mxu0
      %v1296 = vadd.f32 0.0, %v1295
      %v1297 = vpop.f32.mrb[0].mxu0
      %v1298 = vadd.f32 0.0, %v1297
      %v1299 = vpop.f32.mrb[0].mxu0
      %v1300 = vpop.f32.mrb[0].mxu0
      %1301 = vdwg.mxu0
      %v1302 = vtanh.pop %v627
      %v1303 = vtanh.pop %v629
      %v1304 = vtanh.pop %v698
      %v1305 = vtanh.pop %v700
      %v1306 = vtanh.pop %v769
      %v1307 = vtanh.pop %v771
      %v1308 = vtanh.pop %v840
      %v1309 = vtanh.pop %v842
      %v1310 = vtanh.pop %v911
      %v1311 = vtanh.pop %v913
      %v1312 = vtanh.pop %v982
      %v1313 = vtanh.pop %v984
      %v1314 = vtanh.pop %v1053
      %v1315 = vtanh.pop %v1055
      %v1316 = vtanh.pop %v1124
      %v1317 = vtanh.pop %v1126
      %v1318 = vtanh.pop %v1195
      %v1319 = vtanh.pop %v1197
      %v1320 = vtanh.pop %v1266
      %v1321 = vtanh.pop %v1268
      %v1322 = vtanh.pop %v631
      %v1323 = vtanh.pop %v633
      %v1324 = vtanh.pop %v702
      %v1325 = vtanh.pop %v704
      %v1326 = vtanh.pop %v773
      %v1327 = vtanh.pop %v775
      %v1328 = vtanh.pop %v844
      %v1329 = vtanh.pop %v846
      %v1330 = vtanh.pop %v915
      %v1331 = vtanh.pop %v917
      %v1332 = vtanh.pop %v986
      %v1333 = vtanh.pop %v988
      %v1334 = vtanh.pop %v1057
      %v1335 = vtanh.pop %v1059
      %v1336 = vtanh.pop %v1128
      %v1337 = vtanh.pop %v1130
      %v1338 = vtanh.pop %v1199
      %v1339 = vtanh.pop %v1201
      %v1340 = vtanh.pop %v1270
      %v1341 = vtanh.pop %v1272
      %v1342 = vtanh.pop %v637
      %v1343 = vtanh.pop %v639
      %v1344 = vtanh.pop %v708
      %v1345 = vtanh.pop %v710
      %v1346 = vtanh.pop %v779
      %v1347 = vtanh.pop %v781
      %v1348 = vtanh.pop %v850
      %v1349 = vtanh.pop %v852
      %v1350 = vtanh.pop %v921
      %v1351 = vtanh.pop %v923
      %v1352 = vtanh.pop %v992
      %v1353 = vtanh.pop %v994
      %v1354 = vtanh.pop %v1063
      %v1355 = vtanh.pop %v1065
      %v1356 = vtanh.pop %v1134
      %v1357 = vtanh.pop %v1136
      %v1358 = vtanh.pop %v1205
      %v1359 = vtanh.pop %v1207
      %v1360 = vtanh.pop %v1276
      %v1361 = vtanh.pop %v1278
      %v1362 = vtanh.pop %v641
      %v1363 = vtanh.pop %v643
      %v1364 = vtanh.pop %v712
      %v1365 = vtanh.pop %v714
      %v1366 = vtanh.pop %v783
      %v1367 = vtanh.pop %v785
      %v1368 = vtanh.pop %v854
      %v1369 = vtanh.pop %v856
      %v1370 = vtanh.pop %v925
      %v1371 = vtanh.pop %v927
      %v1372 = vtanh.pop %v996
      %v1373 = vtanh.pop %v998
      %v1374 = vtanh.pop %v1067
      %v1375 = vtanh.pop %v1069
      %v1376 = vtanh.pop %v1138
      %v1377 = vtanh.pop %v1140
      %v1378 = vtanh.pop %v1209
      %v1379 = vtanh.pop %v1211
      %v1380 = vtanh.pop %v1280
      %v1381 = vtanh.pop %v1282
      %v1382 = vtanh.pop %v647
      %v1383 = vtanh.pop %v649
      %v1384 = vtanh.pop %v718
      %v1385 = vtanh.pop %v720
      %v1386 = vtanh.pop %v789
      %v1387 = vtanh.pop %v791
      %v1388 = vtanh.pop %v860
      %v1389 = vtanh.pop %v862
      %v1390 = vtanh.pop %v931
      %v1391 = vtanh.pop %v933
      %v1392 = vtanh.pop %v1002
      %v1393 = vtanh.pop %v1004
      %v1394 = vtanh.pop %v1073
      %v1395 = vtanh.pop %v1075
      %v1396 = vtanh.pop %v1144
      %v1397 = vtanh.pop %v1146
      %v1398 = vtanh.pop %v1215
      %v1399 = vtanh.pop %v1217
      %v1400 = vtanh.pop %v1286
      %v1401 = vtanh.pop %v1288
      %v1402 = vtanh.pop %v651
      %v1403 = vtanh.pop %v653
      %v1404 = vtanh.pop %v722
      %v1405 = vtanh.pop %v724
      %v1406 = vtanh.pop %v793
      %v1407 = vtanh.pop %v795
      %v1408 = vtanh.pop %v864
      %v1409 = vtanh.pop %v866
      %v1410 = vtanh.pop %v935
      %v1411 = vtanh.pop %v937
      %v1412 = vtanh.pop %v1006
      %v1413 = vtanh.pop %v1008
      %v1414 = vtanh.pop %v1077
      %v1415 = vtanh.pop %v1079
      %v1416 = vtanh.pop %v1148
      %v1417 = vtanh.pop %v1150
      %v1418 = vtanh.pop %v1219
      %v1419 = vtanh.pop %v1221
      %v1420 = vtanh.pop %v1290
      %v1421 = vtanh.pop %v1292
      %v1422 = vtanh.pop %v657
      %v1423 = vtanh.pop %v659
      %v1424 = vtanh.pop %v728
      %v1425 = vtanh.pop %v730
      %v1426 = vtanh.pop %v799
      %v1427 = vtanh.pop %v801
      %v1428 = vtanh.pop %v870
      %v1429 = vtanh.pop %v872
      %v1430 = vtanh.pop %v941
      %v1431 = vtanh.pop %v943
      %v1432 = vtanh.pop %v1012
      %v1433 = vtanh.pop %v1014
      %v1434 = vtanh.pop %v1083
      %v1435 = vtanh.pop %v1085
      %v1436 = vtanh.pop %v1154
      %v1437 = vtanh.pop %v1156
      %v1438 = vtanh.pop %v1225
      %v1439 = vtanh.pop %v1227
      %v1440 = vtanh.pop %v1296
      %v1441 = vtanh.pop %v1298
      %v1442 = vpack.c.bf16 %v1322, %v1302
      %v1443 = vpack.c.bf16 %v1323, %v1303
      %v1444 = vpack.c.bf16 %v1324, %v1304
      %v1445 = vpack.c.bf16 %v1325, %v1305
      %v1446 = vpack.c.bf16 %v1326, %v1306
      %v1447 = vpack.c.bf16 %v1327, %v1307
      %v1448 = vpack.c.bf16 %v1328, %v1308
      %v1449 = vpack.c.bf16 %v1329, %v1309
      %v1450 = vpack.c.bf16 %v1330, %v1310
      %v1451 = vpack.c.bf16 %v1331, %v1311
      %v1452 = vpack.c.bf16 %v1332, %v1312
      %v1453 = vpack.c.bf16 %v1333, %v1313
      %v1454 = vpack.c.bf16 %v1334, %v1314
      %v1455 = vpack.c.bf16 %v1335, %v1315
      %v1456 = vpack.c.bf16 %v1336, %v1316
      %v1457 = vpack.c.bf16 %v1337, %v1317
      %v1458 = vpack.c.bf16 %v1338, %v1318
      %v1459 = vpack.c.bf16 %v1339, %v1319
      %v1460 = vpack.c.bf16 %v1340, %v1320
      %v1461 = vpack.c.bf16 %v1341, %v1321
      %v1462 = vpack.c.bf16 %v1362, %v1342
      %v1463 = vpack.c.bf16 %v1363, %v1343
      %v1464 = vpack.c.bf16 %v1364, %v1344
      %v1465 = vpack.c.bf16 %v1365, %v1345
      %v1466 = vpack.c.bf16 %v1366, %v1346
      %v1467 = vpack.c.bf16 %v1367, %v1347
      %v1468 = vpack.c.bf16 %v1368, %v1348
      %v1469 = vpack.c.bf16 %v1369, %v1349
      %v1470 = vpack.c.bf16 %v1370, %v1350
      %v1471 = vpack.c.bf16 %v1371, %v1351
      %v1472 = vpack.c.bf16 %v1372, %v1352
      %v1473 = vpack.c.bf16 %v1373, %v1353
      %v1474 = vpack.c.bf16 %v1374, %v1354
      %v1475 = vpack.c.bf16 %v1375, %v1355
      %v1476 = vpack.c.bf16 %v1376, %v1356
      %v1477 = vpack.c.bf16 %v1377, %v1357
      %v1478 = vpack.c.bf16 %v1378, %v1358
      %v1479 = vpack.c.bf16 %v1379, %v1359
      %v1480 = vpack.c.bf16 %v1380, %v1360
      %v1481 = vpack.c.bf16 %v1381, %v1361
      %v1482 = vpack.c.bf16 %v1402, %v1382
      %v1483 = vpack.c.bf16 %v1403, %v1383
      %v1484 = vpack.c.bf16 %v1404, %v1384
      %v1485 = vpack.c.bf16 %v1405, %v1385
      %v1486 = vpack.c.bf16 %v1406, %v1386
      %v1487 = vpack.c.bf16 %v1407, %v1387
      %v1488 = vpack.c.bf16 %v1408, %v1388
      %v1489 = vpack.c.bf16 %v1409, %v1389
      %v1490 = vpack.c.bf16 %v1410, %v1390
      %v1491 = vpack.c.bf16 %v1411, %v1391
      %v1492 = vpack.c.bf16 %v1412, %v1392
      %v1493 = vpack.c.bf16 %v1413, %v1393
      %v1494 = vpack.c.bf16 %v1414, %v1394
      %v1495 = vpack.c.bf16 %v1415, %v1395
      %v1496 = vpack.c.bf16 %v1416, %v1396
      %v1497 = vpack.c.bf16 %v1417, %v1397
      %v1498 = vpack.c.bf16 %v1418, %v1398
      %v1499 = vpack.c.bf16 %v1419, %v1399
      %v1500 = vpack.c.bf16 %v1420, %v1400
      %v1501 = vpack.c.bf16 %v1421, %v1401
      %v1502 = vpack.c.bf16 %v1422, %v1422
      %v1503 = vpack.c.bf16 %v1423, %v1423
      %v1504 = vpack.c.bf16 %v1424, %v1424
      %v1505 = vpack.c.bf16 %v1425, %v1425
      %v1506 = vpack.c.bf16 %v1426, %v1426
      %v1507 = vpack.c.bf16 %v1427, %v1427
      %v1508 = vpack.c.bf16 %v1428, %v1428
      %v1509 = vpack.c.bf16 %v1429, %v1429
      %v1510 = vpack.c.bf16 %v1430, %v1430
      %v1511 = vpack.c.bf16 %v1431, %v1431
      %v1512 = vpack.c.bf16 %v1432, %v1432
      %v1513 = vpack.c.bf16 %v1433, %v1433
      %v1514 = vpack.c.bf16 %v1434, %v1434
      %v1515 = vpack.c.bf16 %v1435, %v1435
      %v1516 = vpack.c.bf16 %v1436, %v1436
      %v1517 = vpack.c.bf16 %v1437, %v1437
      %v1518 = vpack.c.bf16 %v1438, %v1438
      %v1519 = vpack.c.bf16 %v1439, %v1439
      %v1520 = vpack.c.bf16 %v1440, %v1440
      %v1521 = vpack.c.bf16 %v1441, %v1441
      %v1602 = vunpack.c.l.b16 %v1442
      %v1603 = vunpack.c.l.b16 %v1443
      %v1604 = vunpack.c.l.b16 %v1444
      %v1605 = vunpack.c.l.b16 %v1445
      %v1606 = vunpack.c.l.b16 %v1446
      %v1607 = vunpack.c.l.b16 %v1447
      %v1608 = vunpack.c.l.b16 %v1448
      %v1609 = vunpack.c.l.b16 %v1449
      %v1610 = vunpack.c.l.b16 %v1450
      %v1611 = vunpack.c.l.b16 %v1451
      %v1612 = vunpack.c.l.b16 %v1452
      %v1613 = vunpack.c.l.b16 %v1453
      %v1614 = vunpack.c.l.b16 %v1454
      %v1615 = vunpack.c.l.b16 %v1455
      %v1616 = vunpack.c.l.b16 %v1456
      %v1617 = vunpack.c.l.b16 %v1457
      %v1618 = vunpack.c.l.b16 %v1458
      %v1619 = vunpack.c.l.b16 %v1459
      %v1620 = vunpack.c.l.b16 %v1460
      %v1621 = vunpack.c.l.b16 %v1461
      %v1622 = vunpack.c.h.b16 %v1442
      %v1623 = vunpack.c.h.b16 %v1443
      %v1624 = vunpack.c.h.b16 %v1444
      %v1625 = vunpack.c.h.b16 %v1445
      %v1626 = vunpack.c.h.b16 %v1446
      %v1627 = vunpack.c.h.b16 %v1447
      %v1628 = vunpack.c.h.b16 %v1448
      %v1629 = vunpack.c.h.b16 %v1449
      %v1630 = vunpack.c.h.b16 %v1450
      %v1631 = vunpack.c.h.b16 %v1451
      %v1632 = vunpack.c.h.b16 %v1452
      %v1633 = vunpack.c.h.b16 %v1453
      %v1634 = vunpack.c.h.b16 %v1454
      %v1635 = vunpack.c.h.b16 %v1455
      %v1636 = vunpack.c.h.b16 %v1456
      %v1637 = vunpack.c.h.b16 %v1457
      %v1638 = vunpack.c.h.b16 %v1458
      %v1639 = vunpack.c.h.b16 %v1459
      %v1640 = vunpack.c.h.b16 %v1460
      %v1641 = vunpack.c.h.b16 %v1461
      %v1642 = vunpack.c.l.b16 %v1462
      %v1643 = vunpack.c.l.b16 %v1463
      %v1644 = vunpack.c.l.b16 %v1464
      %v1645 = vunpack.c.l.b16 %v1465
      %v1646 = vunpack.c.l.b16 %v1466
      %v1647 = vunpack.c.l.b16 %v1467
      %v1648 = vunpack.c.l.b16 %v1468
      %v1649 = vunpack.c.l.b16 %v1469
      %v1650 = vunpack.c.l.b16 %v1470
      %v1651 = vunpack.c.l.b16 %v1471
      %v1652 = vunpack.c.l.b16 %v1472
      %v1653 = vunpack.c.l.b16 %v1473
      %v1654 = vunpack.c.l.b16 %v1474
      %v1655 = vunpack.c.l.b16 %v1475
      %v1656 = vunpack.c.l.b16 %v1476
      %v1657 = vunpack.c.l.b16 %v1477
      %v1658 = vunpack.c.l.b16 %v1478
      %v1659 = vunpack.c.l.b16 %v1479
      %v1660 = vunpack.c.l.b16 %v1480
      %v1661 = vunpack.c.l.b16 %v1481
      %v1662 = vunpack.c.h.b16 %v1462
      %v1663 = vunpack.c.h.b16 %v1463
      %v1664 = vunpack.c.h.b16 %v1464
      %v1665 = vunpack.c.h.b16 %v1465
      %v1666 = vunpack.c.h.b16 %v1466
      %v1667 = vunpack.c.h.b16 %v1467
      %v1668 = vunpack.c.h.b16 %v1468
      %v1669 = vunpack.c.h.b16 %v1469
      %v1670 = vunpack.c.h.b16 %v1470
      %v1671 = vunpack.c.h.b16 %v1471
      %v1672 = vunpack.c.h.b16 %v1472
      %v1673 = vunpack.c.h.b16 %v1473
      %v1674 = vunpack.c.h.b16 %v1474
      %v1675 = vunpack.c.h.b16 %v1475
      %v1676 = vunpack.c.h.b16 %v1476
      %v1677 = vunpack.c.h.b16 %v1477
      %v1678 = vunpack.c.h.b16 %v1478
      %v1679 = vunpack.c.h.b16 %v1479
      %v1680 = vunpack.c.h.b16 %v1480
      %v1681 = vunpack.c.h.b16 %v1481
      %v1682 = vunpack.c.l.b16 %v1482
      %v1683 = vunpack.c.l.b16 %v1483
      %v1684 = vunpack.c.l.b16 %v1484
      %v1685 = vunpack.c.l.b16 %v1485
      %v1686 = vunpack.c.l.b16 %v1486
      %v1687 = vunpack.c.l.b16 %v1487
      %v1688 = vunpack.c.l.b16 %v1488
      %v1689 = vunpack.c.l.b16 %v1489
      %v1690 = vunpack.c.l.b16 %v1490
      %v1691 = vunpack.c.l.b16 %v1491
      %v1692 = vunpack.c.l.b16 %v1492
      %v1693 = vunpack.c.l.b16 %v1493
      %v1694 = vunpack.c.l.b16 %v1494
      %v1695 = vunpack.c.l.b16 %v1495
      %v1696 = vunpack.c.l.b16 %v1496
      %v1697 = vunpack.c.l.b16 %v1497
      %v1698 = vunpack.c.l.b16 %v1498
      %v1699 = vunpack.c.l.b16 %v1499
      %v1700 = vunpack.c.l.b16 %v1500
      %v1701 = vunpack.c.l.b16 %v1501
      %v1702 = vunpack.c.h.b16 %v1482
      %v1703 = vunpack.c.h.b16 %v1483
      %v1704 = vunpack.c.h.b16 %v1484
      %v1705 = vunpack.c.h.b16 %v1485
      %v1706 = vunpack.c.h.b16 %v1486
      %v1707 = vunpack.c.h.b16 %v1487
      %v1708 = vunpack.c.h.b16 %v1488
      %v1709 = vunpack.c.h.b16 %v1489
      %v1710 = vunpack.c.h.b16 %v1490
      %v1711 = vunpack.c.h.b16 %v1491
      %v1712 = vunpack.c.h.b16 %v1492
      %v1713 = vunpack.c.h.b16 %v1493
      %v1714 = vunpack.c.h.b16 %v1494
      %v1715 = vunpack.c.h.b16 %v1495
      %v1716 = vunpack.c.h.b16 %v1496
      %v1717 = vunpack.c.h.b16 %v1497
      %v1718 = vunpack.c.h.b16 %v1498
      %v1719 = vunpack.c.h.b16 %v1499
      %v1720 = vunpack.c.h.b16 %v1500
      %v1721 = vunpack.c.h.b16 %v1501
      %v1722 = vunpack.c.l.b16 %v1502
      %v1723 = vunpack.c.l.b16 %v1503
      %v1724 = vunpack.c.l.b16 %v1504
      %v1725 = vunpack.c.l.b16 %v1505
      %v1726 = vunpack.c.l.b16 %v1506
      %v1727 = vunpack.c.l.b16 %v1507
      %v1728 = vunpack.c.l.b16 %v1508
      %v1729 = vunpack.c.l.b16 %v1509
      %v1730 = vunpack.c.l.b16 %v1510
      %v1731 = vunpack.c.l.b16 %v1511
      %v1732 = vunpack.c.l.b16 %v1512
      %v1733 = vunpack.c.l.b16 %v1513
      %v1734 = vunpack.c.l.b16 %v1514
      %v1735 = vunpack.c.l.b16 %v1515
      %v1736 = vunpack.c.l.b16 %v1516
      %v1737 = vunpack.c.l.b16 %v1517
      %v1738 = vunpack.c.l.b16 %v1518
      %v1739 = vunpack.c.l.b16 %v1519
      %v1740 = vunpack.c.l.b16 %v1520
      %v1741 = vunpack.c.l.b16 %v1521
      %v1742 = vpack.c.b16 %v1603, %v1602
      %v1743 = vpack.c.b16 %v1605, %v1604
      %v1744 = vpack.c.b16 %v1607, %v1606
      %v1745 = vpack.c.b16 %v1609, %v1608
      %v1746 = vpack.c.b16 %v1611, %v1610
      %v1747 = vpack.c.b16 %v1613, %v1612
      %v1748 = vpack.c.b16 %v1615, %v1614
      %v1749 = vpack.c.b16 %v1617, %v1616
      %v1750 = vpack.c.b16 %v1619, %v1618
      %v1751 = vpack.c.b16 %v1621, %v1620
      %v1752 = vpack.c.b16 %v1623, %v1622
      %v1753 = vpack.c.b16 %v1625, %v1624
      %v1754 = vpack.c.b16 %v1627, %v1626
      %v1755 = vpack.c.b16 %v1629, %v1628
      %v1756 = vpack.c.b16 %v1631, %v1630
      %v1757 = vpack.c.b16 %v1633, %v1632
      %v1758 = vpack.c.b16 %v1635, %v1634
      %v1759 = vpack.c.b16 %v1637, %v1636
      %v1760 = vpack.c.b16 %v1639, %v1638
      %v1761 = vpack.c.b16 %v1641, %v1640
      %v1762 = vpack.c.b16 %v1643, %v1642
      %v1763 = vpack.c.b16 %v1645, %v1644
      %v1764 = vpack.c.b16 %v1647, %v1646
      %v1765 = vpack.c.b16 %v1649, %v1648
      %v1766 = vpack.c.b16 %v1651, %v1650
      %v1767 = vpack.c.b16 %v1653, %v1652
      %v1768 = vpack.c.b16 %v1655, %v1654
      %v1769 = vpack.c.b16 %v1657, %v1656
      %v1770 = vpack.c.b16 %v1659, %v1658
      %v1771 = vpack.c.b16 %v1661, %v1660
      %v1772 = vpack.c.b16 %v1663, %v1662
      %v1773 = vpack.c.b16 %v1665, %v1664
      %v1774 = vpack.c.b16 %v1667, %v1666
      %v1775 = vpack.c.b16 %v1669, %v1668
      %v1776 = vpack.c.b16 %v1671, %v1670
      %v1777 = vpack.c.b16 %v1673, %v1672
      %v1778 = vpack.c.b16 %v1675, %v1674
      %v1779 = vpack.c.b16 %v1677, %v1676
      %v1780 = vpack.c.b16 %v1679, %v1678
      %v1781 = vpack.c.b16 %v1681, %v1680
      %v1782 = vpack.c.b16 %v1683, %v1682
      %v1783 = vpack.c.b16 %v1685, %v1684
      %v1784 = vpack.c.b16 %v1687, %v1686
      %v1785 = vpack.c.b16 %v1689, %v1688
      %v1786 = vpack.c.b16 %v1691, %v1690
      %v1787 = vpack.c.b16 %v1693, %v1692
      %v1788 = vpack.c.b16 %v1695, %v1694
      %v1789 = vpack.c.b16 %v1697, %v1696
      %v1790 = vpack.c.b16 %v1699, %v1698
      %v1791 = vpack.c.b16 %v1701, %v1700
      %v1792 = vpack.c.b16 %v1703, %v1702
      %v1793 = vpack.c.b16 %v1705, %v1704
      %v1794 = vpack.c.b16 %v1707, %v1706
      %v1795 = vpack.c.b16 %v1709, %v1708
      %v1796 = vpack.c.b16 %v1711, %v1710
      %v1797 = vpack.c.b16 %v1713, %v1712
      %v1798 = vpack.c.b16 %v1715, %v1714
      %v1799 = vpack.c.b16 %v1717, %v1716
      %v1800 = vpack.c.b16 %v1719, %v1718
      %v1801 = vpack.c.b16 %v1721, %v1720
      %v1802 = vpack.c.b16 %v1723, %v1722
      %v1803 = vpack.c.b16 %v1725, %v1724
      %v1804 = vpack.c.b16 %v1727, %v1726
      %v1805 = vpack.c.b16 %v1729, %v1728
      %v1806 = vpack.c.b16 %v1731, %v1730
      %v1807 = vpack.c.b16 %v1733, %v1732
      %v1808 = vpack.c.b16 %v1735, %v1734
      %v1809 = vpack.c.b16 %v1737, %v1736
      %v1810 = vpack.c.b16 %v1739, %v1738
      %v1811 = vpack.c.b16 %v1741, %v1740
      %1882 = vst [vmem:[%s147] sm:$0xff] %v1742
      %1883 = vst [vmem:[%s147 + $0x8] sm:$0xff] %v1743
      %1884 = vst [vmem:[%s147 + $0x10] sm:$0xff] %v1744
      %1885 = vst [vmem:[%s147 + $0x18] sm:$0xff] %v1745
      %1886 = vst [vmem:[%s147 + $0x20] sm:$0xff] %v1746
      %1887 = vst [vmem:[%s147 + $0x28] sm:$0xff] %v1747
      %1888 = vst [vmem:[%s147 + $0x30] sm:$0xff] %v1748
      %1889 = vst [vmem:[%s147 + $0x38] sm:$0xff] %v1749
      %1890 = vst [vmem:[%s147 + $0x40] sm:$0xff] %v1750
      %1891 = vst [vmem:[%s147 + $0x48] sm:$0xff] %v1751
      %1892 = vst [vmem:[%s147 + $0x50] sm:$0xff] %v1752
      %1893 = vst [vmem:[%s147 + $0x58] sm:$0xff] %v1753
      %1894 = vst [vmem:[%s147 + $0x60] sm:$0xff] %v1754
      %1895 = vst [vmem:[%s147 + $0x68] sm:$0xff] %v1755
      %1896 = vst [vmem:[%s147 + $0x70] sm:$0xff] %v1756
      %1897 = vst [vmem:[%s147 + $0x78] sm:$0xff] %v1757
      %1898 = vst [vmem:[%s147 + $0x80] sm:$0xff] %v1758
      %1899 = vst [vmem:[%s147 + $0x88] sm:$0xff] %v1759
      %1900 = vst [vmem:[%s147 + $0x90] sm:$0xff] %v1760
      %1901 = vst [vmem:[%s147 + $0x98] sm:$0xff] %v1761
      %1902 = vst [vmem:[%s147 + $0xa0] sm:$0xff] %v1762
      %1903 = vst [vmem:[%s147 + $0xa8] sm:$0xff] %v1763
      %1904 = vst [vmem:[%s147 + $0xb0] sm:$0xff] %v1764
      %1905 = vst [vmem:[%s147 + $0xb8] sm:$0xff] %v1765
      %1906 = vst [vmem:[%s147 + $0xc0] sm:$0xff] %v1766
      %1907 = vst [vmem:[%s147 + $0xc8] sm:$0xff] %v1767
      %1908 = vst [vmem:[%s147 + $0xd0] sm:$0xff] %v1768
      %1909 = vst [vmem:[%s147 + $0xd8] sm:$0xff] %v1769
      %1910 = vst [vmem:[%s147 + $0xe0] sm:$0xff] %v1770
      %1911 = vst [vmem:[%s147 + $0xe8] sm:$0xff] %v1771
      %1912 = vst [vmem:[%s147 + $0xf0] sm:$0xff] %v1772
      %1913 = vst [vmem:[%s147 + $0xf8] sm:$0xff] %v1773
      %1914 = vst [vmem:[%s147 + $0x100] sm:$0xff] %v1774
      %1915 = vst [vmem:[%s147 + $0x108] sm:$0xff] %v1775
      %1916 = vst [vmem:[%s147 + $0x110] sm:$0xff] %v1776
      %1917 = vst [vmem:[%s147 + $0x118] sm:$0xff] %v1777
      %1918 = vst [vmem:[%s147 + $0x120] sm:$0xff] %v1778
      %1919 = vst [vmem:[%s147 + $0x128] sm:$0xff] %v1779
      %1920 = vst [vmem:[%s147 + $0x130] sm:$0xff] %v1780
      %1921 = vst [vmem:[%s147 + $0x138] sm:$0xff] %v1781
      %1922 = vst [vmem:[%s147 + $0x140] sm:$0xff] %v1782
      %1923 = vst [vmem:[%s147 + $0x148] sm:$0xff] %v1783
      %1924 = vst [vmem:[%s147 + $0x150] sm:$0xff] %v1784
      %1925 = vst [vmem:[%s147 + $0x158] sm:$0xff] %v1785
      %1926 = vst [vmem:[%s147 + $0x160] sm:$0xff] %v1786
      %1927 = vst [vmem:[%s147 + $0x168] sm:$0xff] %v1787
      %1928 = vst [vmem:[%s147 + $0x170] sm:$0xff] %v1788
      %1929 = vst [vmem:[%s147 + $0x178] sm:$0xff] %v1789
      %1930 = vst [vmem:[%s147 + $0x180] sm:$0xff] %v1790
      %1931 = vst [vmem:[%s147 + $0x188] sm:$0xff] %v1791
      %1932 = vst [vmem:[%s147 + $0x190] sm:$0xff] %v1792
      %1933 = vst [vmem:[%s147 + $0x198] sm:$0xff] %v1793
      %1934 = vst [vmem:[%s147 + $0x1a0] sm:$0xff] %v1794
      %1935 = vst [vmem:[%s147 + $0x1a8] sm:$0xff] %v1795
      %1936 = vst [vmem:[%s147 + $0x1b0] sm:$0xff] %v1796
      %1937 = vst [vmem:[%s147 + $0x1b8] sm:$0xff] %v1797
      %1938 = vst [vmem:[%s147 + $0x1c0] sm:$0xff] %v1798
      %1939 = vst [vmem:[%s147 + $0x1c8] sm:$0xff] %v1799
      %1940 = vst [vmem:[%s147 + $0x1d0] sm:$0xff] %v1800
      %1941 = vst [vmem:[%s147 + $0x1d8] sm:$0xff] %v1801
      %1942 = vst [vmem:[%s147 + $0x1e0] sm:$0xff] %v1802
      %1943 = vst [vmem:[%s147 + $0x1e8] sm:$0xff] %v1803
      %1944 = vst [vmem:[%s147 + $0x1f0] sm:$0xff] %v1804
      %1945 = vst [vmem:[%s147 + $0x1f8] sm:$0xff] %v1805
      %1946 = vst [vmem:[%s147 + $0x200] sm:$0xff] %v1806
      %1947 = vst [vmem:[%s147 + $0x208] sm:$0xff] %v1807
      %1948 = vst [vmem:[%s147 + $0x210] sm:$0xff] %v1808
      %1949 = vst [vmem:[%s147 + $0x218] sm:$0xff] %v1809
      %1950 = vst [vmem:[%s147 + $0x220] sm:$0xff] %v1810
      %1951 = vst [vmem:[%s147 + $0x228] sm:$0xff] %v1811
      %s1952 = smul.u32 7, %s13
      %p1953 = scmp.lt.s32.totalorder %s1952, 27
      %s1954 = scalar_select %p1953, %s1952, 27
      %s1955 = smul.addr %s1954, 20
      %s1956 = smul.addr %s1955, 4
      %s1957 = scalar_lea.vmem %s2, %s1956
      // Predicated region
      $region29: #{conv_transpose_tanh.1} parent=27 // pred_check
        %p1958 = pneg %p78
      $region30: #{conv_transpose_tanh.1} parent=27 // pred_check_branch
        %1960 = sbr.rel (%p1958) target = $region32
      $region31: #{conv_transpose_tanh.1} parent=27 // pred_region
        %s1961 = smul.u32 7, %s13
      $region32: #{conv_transpose_tanh.1} parent=27 // pred_fallthru
        _
    $region28: #{conv_transpose_tanh.1} parent=5 // pred_fallthru
      _
    %p1962 = scmp.le.s32.totalorder 2, %s8
    // Predicated region
    $region33: #{conv_transpose_tanh.1} parent=5 // pred_check
      %p1963 = pneg %p1962
    $region34: #{conv_transpose_tanh.1} parent=5 // pred_check_branch
      %1965 = sbr.rel (%p1963) target = $region36
    $region35: #{conv_transpose_tanh.1} parent=5 // pred_region
      %s1966 = ssub.s32 %s8, 2
      // Predicated region
      $region37: #{conv_transpose_tanh.1} parent=35 // pred_check
        %p1967 = pneg %p84
      $region38: #{conv_transpose_tanh.1} parent=35 // pred_check_branch
        %1969 = sbr.rel (%p1967) target = $region40
      $region39: #{conv_transpose_tanh.1} parent=35 // pred_region
        %s1970 = smul.u32 7, %s14
        %p1971 = scmp.lt.s32.totalorder %s1970, 27
        %s1972 = scalar_select %p1971, %s1970, 27
        %s1973 = smul.addr %s1972, 20
        %s1974 = smul.addr %s1973, 4
        %s1975 = scalar_lea.vmem %s2, %s1974
      $region40: #{conv_transpose_tanh.1} parent=35 // pred_fallthru
        _
    $region36: #{conv_transpose_tanh.1} parent=5 // pred_fallthru
      _
  $region6: #{conv_transpose_tanh.1} parent=0 // loop_footer
    %s12 = sadd.s32 1, %s8
  $region7: #{conv_transpose_tanh.1} parent=0 // loop_footer_branch
    %7 = sbr.rel target = $region3
  $region8: #{conv_transpose_tanh.1} parent=0 // loop_exit
    _

</llo_original>
